<compile_context>
chip_gen: v6e
topology: v6e:2x2x1
jax: 0.10.0
libtpu: 0.0.40
codegen_flags: <defaults>
</compile_context>

<pallas_src>
import functools

import jax
import jax.numpy as jnp
from jax.experimental import pallas as pl
from jax.experimental.pallas import tpu as pltpu

_LANE = 128                    # lane width: pad output channels to this
_TM = 512                      # M tile (multiple of 128 and 256)
_VMEM_LIMIT = 40 * 1024 * 1024 # < 64 MiB (v7x per-TC VMEM), > defaults


def _round_up(n, m):
    return ((n + m - 1) // m) * m


# ---------------------------------------------------------------------------
# Pallas kernel: fused (relu?)(A) @ W1 [-> relu -> @ W2] + bias + residual,
# optional output ReLU.  bf16 MXU inputs, f32 accumulate/epilogue.
# ---------------------------------------------------------------------------
def _fused_kernel(*refs, in_relu, out_relu, has_bias, two_stage, has_res):
    it = iter(refs)
    a_ref = next(it)
    w1_ref = next(it)
    w2_ref = next(it) if two_stage else None
    bias_ref = next(it) if has_bias else None
    res_ref = next(it) if has_res else None
    o_ref = next(it)

    a = a_ref[...]
    if in_relu:
        a = jnp.maximum(a, 0.0)
    acc = jnp.dot(a, w1_ref[...], preferred_element_type=jnp.float32)
    if two_stage:
        h = jnp.maximum(acc, 0.0).astype(w2_ref.dtype)
        acc = jnp.dot(h, w2_ref[...], preferred_element_type=jnp.float32)
    if has_bias:
        acc = acc + bias_ref[...]          # (1, N) broadcasts over rows
    if has_res:
        acc = acc + res_ref[...]
    if out_relu:
        acc = jnp.maximum(acc, 0.0)
    o_ref[...] = acc.astype(o_ref.dtype)


def _fused_matmul(a, w1, w2=None, bias=None, residual=None, *,
                  in_relu=False, out_relu=False):
    """a: (M, K) f32, w1: (K, N1), w2: (N1, N) or None, bias: (N,) padded,
    residual: (M, N) f32.  N / N1 are already lane-padded by the caller."""
    M, K = a.shape
    K1, N1 = w1.shape
    assert K == K1
    N = w2.shape[1] if w2 is not None else N1

    tm = M if M < _TM else _TM             # full block if small (exempt rule)
    grid = (pl.cdiv(M, tm),)

    inputs = [a.astype(jnp.bfloat16)]
    in_specs = [pl.BlockSpec((tm, K), lambda i: (i, 0))]
    flops = 2 * M * K * N1

    inputs.append(w1.astype(jnp.bfloat16))
    in_specs.append(pl.BlockSpec((K, N1), lambda i: (0, 0)))     # resident

    if w2 is not None:
        inputs.append(w2.astype(jnp.bfloat16))
        in_specs.append(pl.BlockSpec(w2.shape, lambda i: (0, 0)))  # resident
        flops += 2 * M * N1 * N
    if bias is not None:
        inputs.append(bias.reshape(1, N).astype(jnp.float32))
        in_specs.append(pl.BlockSpec((1, N), lambda i: (0, 0)))    # resident
    if residual is not None:
        inputs.append(residual.astype(jnp.float32))
        in_specs.append(pl.BlockSpec((tm, N), lambda i: (i, 0)))

    kernel = functools.partial(
        _fused_kernel,
        in_relu=in_relu, out_relu=out_relu,
        has_bias=bias is not None,
        two_stage=w2 is not None,
        has_res=residual is not None,
    )

    bytes_accessed = sum(int(x.size) * x.dtype.itemsize for x in inputs)
    bytes_accessed += M * N * 4

    return pl.pallas_call(
        kernel,
        grid=grid,
        in_specs=in_specs,
        out_specs=pl.BlockSpec((tm, N), lambda i: (i, 0)),
        out_shape=jax.ShapeDtypeStruct((M, N), jnp.float32),
        compiler_params=pltpu.CompilerParams(
            dimension_semantics=("parallel",),
            vmem_limit_bytes=_VMEM_LIMIT,
        ),
        cost_estimate=pl.CostEstimate(
            flops=flops, transcendentals=0, bytes_accessed=bytes_accessed),
    )(*inputs)


# ---------------------------------------------------------------------------
# Conv2d = im2col (JAX glue) + Pallas fused matmul
# ---------------------------------------------------------------------------
def _im2col(x_nhwc, kh, kw, stride, padding):
    n, h, w, c = x_nhwc.shape
    xp = jnp.pad(x_nhwc, ((0, 0), (padding, padding), (padding, padding), (0, 0)))
    oh = (h + 2 * padding - kh) // stride + 1
    ow = (w + 2 * padding - kw) // stride + 1
    cols = []
    for i in range(kh):
        for j in range(kw):
            cols.append(xp[:, i:i + stride * oh:stride, j:j + stride * ow:stride, :])
    patches = jnp.stack(cols, axis=3)                    # (N, OH, OW, KH*KW, C)
    return patches.reshape(n * oh * ow, kh * kw * c), (n, oh, ow)


def _weight_matrix(w_oihw):
    """(O, C, KH, KW) -> (KH*KW*C, O), matching the im2col flattening order."""
    o, c, kh, kw = w_oihw.shape
    return jnp.transpose(w_oihw, (2, 3, 1, 0)).reshape(kh * kw * c, o)


def conv2d(x_nhwc, w_oihw, bias=None, *, stride=1, padding=0, out_relu=False):
    """nn.Conv2d on NHWC data with fused bias add / output ReLU."""
    o, c, kh, kw = w_oihw.shape
    patches, (n, oh, ow) = _im2col(x_nhwc, kh, kw, stride, padding)
    n_pad = _round_up(o, _LANE)
    w_mat = _weight_matrix(w_oihw)
    if n_pad != o:
        w_mat = jnp.pad(w_mat, ((0, 0), (0, n_pad - o)))
    b = None
    if bias is not None:
        b = jnp.pad(bias, (0, n_pad - o)) if n_pad != o else bias
    out = _fused_matmul(patches, w_mat, bias=b, out_relu=out_relu)
    return out[:, :o].reshape(n, oh, ow, o)


def residual_block(x_nhwc, w3_oihw, w1_oihw, *, out_relu):
    """x + conv1x1(relu(conv3x3(relu(x)))) — single fused pallas_call."""
    n, h, w, c = x_nhwc.shape
    r = w3_oihw.shape[0]                     # num_residual_hiddens
    o = w1_oihw.shape[0]                     # num_hiddens (== c)

    patches, (n_, oh, ow) = _im2col(x_nhwc, 3, 3, 1, 1)
    m = n * oh * ow

    r_pad = _round_up(r, _LANE)
    n_pad = _round_up(o, _LANE)

    w3_mat = _weight_matrix(w3_oihw)                      # (9*C, R)
    w3_mat = jnp.pad(w3_mat, ((0, 0), (0, r_pad - r)))
    w1_mat = _weight_matrix(w1_oihw)                      # (R, O)  (1x1 conv)
    w1_mat = jnp.pad(w1_mat, ((0, r_pad - r), (0, n_pad - o)))

    res = x_nhwc.reshape(m, c)
    if n_pad != c:
        res = jnp.pad(res, ((0, 0), (0, n_pad - c)))

    out = _fused_matmul(patches, w3_mat, w2=w1_mat, residual=res,
                        in_relu=True, out_relu=out_relu)
    return out[:, :o].reshape(n, oh, ow, o)


# ---------------------------------------------------------------------------
# Encoder forward (matches the PyTorch module semantics)
# ---------------------------------------------------------------------------
def encoder_forward(params, x_nchw, num_residual_layers):
    x = jnp.transpose(x_nchw, (0, 2, 3, 1)).astype(jnp.float32)   # NCHW -> NHWC

    # conv_1 -> ReLU
    x = conv2d(x, params["conv1_w"], params["conv1_b"],
               stride=2, padding=1, out_relu=True)
    # conv_2 -> ReLU
    x = conv2d(x, params["conv2_w"], params["conv2_b"],
               stride=2, padding=1, out_relu=True)
    # conv_3 (no activation)
    x = conv2d(x, params["conv3_w"], params["conv3_b"], stride=1, padding=1)

    # Residual stack: layers share weights (PyTorch's `[Residual(...)] * L`).
    # Final F.relu of the stack is fused into the last layer's output.
    for layer in range(num_residual_layers):
        is_last = layer == num_residual_layers - 1
        x = residual_block(x, params["res_w3"], params["res_w1"],
                           out_relu=is_last)
    if num_residual_layers == 0:
        x = jnp.maximum(x, 0.0)              # ResidualStack's trailing F.relu

    return jnp.transpose(x, (0, 3, 1, 2))                         # NHWC -> NCHW


def init_params(key, in_channels, num_hiddens, num_residual_hiddens):
    ks = jax.random.split(key, 8)
    nh2 = num_hiddens // 2

    def w(k, shape):
        return (0.1 * jax.random.normal(k, shape)).astype(jnp.float32)

    return {
        "conv1_w": w(ks[0], (nh2, in_channels, 4, 4)),
        "conv1_b": w(ks[1], (nh2,)),
        "conv2_w": w(ks[2], (num_hiddens, nh2, 4, 4)),
        "conv2_b": w(ks[3], (num_hiddens,)),
        "conv3_w": w(ks[4], (num_hiddens, num_hiddens, 3, 3)),
        "conv3_b": w(ks[5], (num_hiddens,)),
        # shared residual-block weights (no bias, per nn.Conv2d(bias=False))
        "res_w3": w(ks[6], (num_residual_hiddens, num_hiddens, 3, 3)),
        "res_w1": w(ks[7], (num_hiddens, num_residual_hiddens, 1, 1)),
    }


if __name__ == "__main__":
    key = jax.random.PRNGKey(0)
    kx, kp = jax.random.split(key)

    batch, in_channels, H, W = 2, 4, 16, 16
    num_hiddens, num_residual_layers, num_residual_hiddens = 32, 2, 8

    x = jax.random.normal(kx, (batch, in_channels, H, W), dtype=jnp.float32)
    params = init_params(kp, in_channels, num_hiddens, num_residual_hiddens)

    fwd = jax.jit(encoder_forward, static_argnames=("num_residual_layers",))
    out = fwd(params, x, num_residual_layers=num_residual_layers)
    out = jax.block_until_ready(out)

    assert out.shape == (batch, num_hiddens, H // 4, W // 4), out.shape
    assert bool(jnp.all(out >= 0.0))  # final F.relu of the residual stack
    print("KERNEL_OK")
</pallas_src>

<mosaic_0001>
module attributes {stable_mosaic.version = 11 : i64} {
  func.func @_fused_kernel(%arg0: i32, %arg1: memref<128x64xbf16, #tpu.memory_space<vmem>>, %arg2: memref<64x128xbf16, #tpu.memory_space<vmem>>, %arg3: memref<1x128xf32, #tpu.memory_space<vmem>>, %arg4: memref<128x128xf32, #tpu.memory_space<vmem>>) attributes {dimension_semantics = [#tpu.dimension_semantics<parallel>], iteration_bounds = array<i64: 1>, scalar_prefetch = 0 : i64, scratch_operands = 0 : i64, tpu.core_type = #tpu.core_type<tc>, window_params = [{transform_indices = @transform_0, window_bounds = array<i64: 128, 64>}, {pipeline_mode = #tpu.pipeline_mode<synchronous>, transform_indices = @transform_1, window_bounds = array<i64: 64, 128>}, {pipeline_mode = #tpu.pipeline_mode<synchronous>, transform_indices = @transform_2, window_bounds = array<i64: 1, 128>}, {transform_indices = @transform_3, window_bounds = array<i64: 128, 128>}]} {
    %c0 = arith.constant 0 : index
    %c0_0 = arith.constant 0 : index
    %0 = vector.load %arg1[%c0, %c0_0] : memref<128x64xbf16, #tpu.memory_space<vmem>>, vector<128x64xbf16>
    %c0_1 = arith.constant 0 : index
    %c0_2 = arith.constant 0 : index
    %1 = vector.load %arg2[%c0_1, %c0_2] : memref<64x128xbf16, #tpu.memory_space<vmem>>, vector<64x128xbf16>
    %cst = arith.constant dense<0.000000e+00> : vector<128x128xf32>
    %2 = tpu.matmul %0, %1, %cst {dimension_numbers = #tpu.dot_dimension_numbers<[1], [0], [0], [1], [0, 0, 1, 1], [], []>} : vector<128x64xbf16>, vector<64x128xbf16>, vector<128x128xf32> -> vector<128x128xf32>
    %c0_3 = arith.constant 0 : index
    %c0_4 = arith.constant 0 : index
    %3 = vector.load %arg3[%c0_3, %c0_4] : memref<1x128xf32, #tpu.memory_space<vmem>>, vector<1x128xf32>
    %4 = vector.broadcast %3 : vector<1x128xf32> to vector<128x128xf32>
    %5 = arith.addf %2, %4 : vector<128x128xf32>
    %cst_5 = arith.constant 0.000000e+00 : f32
    %6 = vector.broadcast %cst_5 : f32 to vector<128x128xf32>
    %7 = arith.maximumf %5, %6 : vector<128x128xf32>
    %c0_6 = arith.constant 0 : index
    %c0_7 = arith.constant 0 : index
    %8 = vector.load %arg4[%c0_6, %c0_7] : memref<128x128xf32, #tpu.memory_space<vmem>>, vector<128x128xf32>
    tpu.vector_store %arg4[%c0_6, %c0_7], %7 {strides = array<i32>} : memref<128x128xf32, #tpu.memory_space<vmem>>, vector<128x128xf32>,
    return
  }
  func.func @transform_0(%arg0: i32) -> (i32, i32) {
    %c0_i32 = arith.constant 0 : i32
    %c0_i32_0 = arith.constant 0 : i32
    return %arg0, %c0_i32 : i32, i32
  }
  func.func @transform_1(%arg0: i32) -> (i32, i32) {
    %c0_i32 = arith.constant 0 : i32
    %c0_i32_0 = arith.constant 0 : i32
    %c0_i32_1 = arith.constant 0 : i32
    return %c0_i32, %c0_i32_0 : i32, i32
  }
  func.func @transform_2(%arg0: i32) -> (i32, i32) {
    %c0_i32 = arith.constant 0 : i32
    %c0_i32_0 = arith.constant 0 : i32
    %c0_i32_1 = arith.constant 0 : i32
    return %c0_i32, %c0_i32_0 : i32, i32
  }
  func.func @transform_3(%arg0: i32) -> (i32, i32) {
    %c0_i32 = arith.constant 0 : i32
    %c0_i32_0 = arith.constant 0 : i32
    return %arg0, %c0_i32 : i32, i32
  }
}

module attributes {stable_mosaic.version = 11 : i64} {
  func.func @_fused_kernel(%arg0: i32, %arg1: memref<32x256xbf16, #tpu.memory_space<vmem>>, %arg2: memref<256x128xbf16, #tpu.memory_space<vmem>>, %arg3: memref<1x128xf32, #tpu.memory_space<vmem>>, %arg4: memref<32x128xf32, #tpu.memory_space<vmem>>) attributes {dimension_semantics = [#tpu.dimension_semantics<parallel>], iteration_bounds = array<i64: 1>, scalar_prefetch = 0 : i64, scratch_operands = 0 : i64, tpu.core_type = #tpu.core_type<tc>, window_params = [{transform_indices = @transform_0, window_bounds = array<i64: 32, 256>}, {pipeline_mode = #tpu.pipeline_mode<synchronous>, transform_indices = @transform_1, window_bounds = array<i64: 256, 128>}, {pipeline_mode = #tpu.pipeline_mode<synchronous>, transform_indices = @transform_2, window_bounds = array<i64: 1, 128>}, {transform_indices = @transform_3, window_bounds = array<i64: 32, 128>}]} {
    %c0 = arith.constant 0 : index
    %c0_0 = arith.constant 0 : index
    %0 = vector.load %arg1[%c0, %c0_0] : memref<32x256xbf16, #tpu.memory_space<vmem>>, vector<32x256xbf16>
    %c0_1 = arith.constant 0 : index
    %c0_2 = arith.constant 0 : index
    %1 = vector.load %arg2[%c0_1, %c0_2] : memref<256x128xbf16, #tpu.memory_space<vmem>>, vector<256x128xbf16>
    %cst = arith.constant dense<0.000000e+00> : vector<32x128xf32>
    %2 = tpu.matmul %0, %1, %cst {dimension_numbers = #tpu.dot_dimension_numbers<[1], [0], [0], [1], [0, 0, 1, 1], [], []>} : vector<32x256xbf16>, vector<256x128xbf16>, vector<32x128xf32> -> vector<32x128xf32>
    %c0_3 = arith.constant 0 : index
    %c0_4 = arith.constant 0 : index
    %3 = vector.load %arg3[%c0_3, %c0_4] : memref<1x128xf32, #tpu.memory_space<vmem>>, vector<1x128xf32>
    %4 = vector.broadcast %3 : vector<1x128xf32> to vector<32x128xf32>
    %5 = arith.addf %2, %4 : vector<32x128xf32>
    %cst_5 = arith.constant 0.000000e+00 : f32
    %6 = vector.broadcast %cst_5 : f32 to vector<32x128xf32>
    %7 = arith.maximumf %5, %6 : vector<32x128xf32>
    %c0_6 = arith.constant 0 : index
    %c0_7 = arith.constant 0 : index
    %8 = vector.load %arg4[%c0_6, %c0_7] : memref<32x128xf32, #tpu.memory_space<vmem>>, vector<32x128xf32>
    tpu.vector_store %arg4[%c0_6, %c0_7], %7 {strides = array<i32>} : memref<32x128xf32, #tpu.memory_space<vmem>>, vector<32x128xf32>,
    return
  }
  func.func @transform_0(%arg0: i32) -> (i32, i32) {
    %c0_i32 = arith.constant 0 : i32
    %c0_i32_0 = arith.constant 0 : i32
    return %arg0, %c0_i32 : i32, i32
  }
  func.func @transform_1(%arg0: i32) -> (i32, i32) {
    %c0_i32 = arith.constant 0 : i32
    %c0_i32_0 = arith.constant 0 : i32
    %c0_i32_1 = arith.constant 0 : i32
    return %c0_i32, %c0_i32_0 : i32, i32
  }
  func.func @transform_2(%arg0: i32) -> (i32, i32) {
    %c0_i32 = arith.constant 0 : i32
    %c0_i32_0 = arith.constant 0 : i32
    %c0_i32_1 = arith.constant 0 : i32
    return %c0_i32, %c0_i32_0 : i32, i32
  }
  func.func @transform_3(%arg0: i32) -> (i32, i32) {
    %c0_i32 = arith.constant 0 : i32
    %c0_i32_0 = arith.constant 0 : i32
    return %arg0, %c0_i32 : i32, i32
  }
}

module attributes {stable_mosaic.version = 11 : i64} {
  func.func @_fused_kernel(%arg0: i32, %arg1: memref<32x288xbf16, #tpu.memory_space<vmem>>, %arg2: memref<288x128xbf16, #tpu.memory_space<vmem>>, %arg3: memref<128x128xbf16, #tpu.memory_space<vmem>>, %arg4: memref<32x128xf32, #tpu.memory_space<vmem>>, %arg5: memref<32x128xf32, #tpu.memory_space<vmem>>) attributes {dimension_semantics = [#tpu.dimension_semantics<parallel>], iteration_bounds = array<i64: 1>, scalar_prefetch = 0 : i64, scratch_operands = 0 : i64, tpu.core_type = #tpu.core_type<tc>, window_params = [{transform_indices = @transform_0, window_bounds = array<i64: 32, 288>}, {pipeline_mode = #tpu.pipeline_mode<synchronous>, transform_indices = @transform_1, window_bounds = array<i64: 288, 128>}, {pipeline_mode = #tpu.pipeline_mode<synchronous>, transform_indices = @transform_2, window_bounds = array<i64: 128, 128>}, {transform_indices = @transform_3, window_bounds = array<i64: 32, 128>}, {transform_indices = @transform_4, window_bounds = array<i64: 32, 128>}]} {
    %c0 = arith.constant 0 : index
    %c0_0 = arith.constant 0 : index
    %0 = vector.load %arg1[%c0, %c0_0] : memref<32x288xbf16, #tpu.memory_space<vmem>>, vector<32x288xbf16>
    %cst = arith.constant 0.000000e+00 : bf16
    %1 = vector.broadcast %cst : bf16 to vector<32x288xbf16>
    %2 = arith.maximumf %0, %1 : vector<32x288xbf16>
    %c0_1 = arith.constant 0 : index
    %c0_2 = arith.constant 0 : index
    %3 = vector.load %arg2[%c0_1, %c0_2] : memref<288x128xbf16, #tpu.memory_space<vmem>>, vector<288x128xbf16>
    %cst_3 = arith.constant dense<0.000000e+00> : vector<32x128xf32>
    %4 = tpu.matmul %2, %3, %cst_3 {dimension_numbers = #tpu.dot_dimension_numbers<[1], [0], [0], [1], [0, 0, 1, 1], [], []>} : vector<32x288xbf16>, vector<288x128xbf16>, vector<32x128xf32> -> vector<32x128xf32>
    %cst_4 = arith.constant 0.000000e+00 : f32
    %5 = vector.broadcast %cst_4 : f32 to vector<32x128xf32>
    %6 = arith.maximumf %4, %5 : vector<32x128xf32>
    %7 = arith.truncf %6 : vector<32x128xf32> to vector<32x128xbf16>
    %c0_5 = arith.constant 0 : index
    %c0_6 = arith.constant 0 : index
    %8 = vector.load %arg3[%c0_5, %c0_6] : memref<128x128xbf16, #tpu.memory_space<vmem>>, vector<128x128xbf16>
    %cst_7 = arith.constant dense<0.000000e+00> : vector<32x128xf32>
    %9 = tpu.matmul %7, %8, %cst_7 {dimension_numbers = #tpu.dot_dimension_numbers<[1], [0], [0], [1], [0, 0, 1, 1], [], []>} : vector<32x128xbf16>, vector<128x128xbf16>, vector<32x128xf32> -> vector<32x128xf32>
    %c0_8 = arith.constant 0 : index
    %c0_9 = arith.constant 0 : index
    %10 = vector.load %arg4[%c0_8, %c0_9] : memref<32x128xf32, #tpu.memory_space<vmem>>, vector<32x128xf32>
    %11 = arith.addf %9, %10 : vector<32x128xf32>
    %c0_10 = arith.constant 0 : index
    %c0_11 = arith.constant 0 : index
    %12 = vector.load %arg5[%c0_10, %c0_11] : memref<32x128xf32, #tpu.memory_space<vmem>>, vector<32x128xf32>
    tpu.vector_store %arg5[%c0_10, %c0_11], %11 {strides = array<i32>} : memref<32x128xf32, #tpu.memory_space<vmem>>, vector<32x128xf32>,
    return
  }
  func.func @transform_0(%arg0: i32) -> (i32, i32) {
    %c0_i32 = arith.constant 0 : i32
    %c0_i32_0 = arith.constant 0 : i32
    return %arg0, %c0_i32 : i32, i32
  }
  func.func @transform_1(%arg0: i32) -> (i32, i32) {
    %c0_i32 = arith.constant 0 : i32
    %c0_i32_0 = arith.constant 0 : i32
    %c0_i32_1 = arith.constant 0 : i32
    return %c0_i32, %c0_i32_0 : i32, i32
  }
  func.func @transform_2(%arg0: i32) -> (i32, i32) {
    %c0_i32 = arith.constant 0 : i32
    %c0_i32_0 = arith.constant 0 : i32
    %c0_i32_1 = arith.constant 0 : i32
    return %c0_i32, %c0_i32_0 : i32, i32
  }
  func.func @transform_3(%arg0: i32) -> (i32, i32) {
    %c0_i32 = arith.constant 0 : i32
    %c0_i32_0 = arith.constant 0 : i32
    return %arg0, %c0_i32 : i32, i32
  }
  func.func @transform_4(%arg0: i32) -> (i32, i32) {
    %c0_i32 = arith.constant 0 : i32
    %c0_i32_0 = arith.constant 0 : i32
    return %arg0, %c0_i32 : i32, i32
  }
}

module attributes {stable_mosaic.version = 11 : i64} {
  func.func @_fused_kernel(%arg0: i32, %arg1: memref<32x288xbf16, #tpu.memory_space<vmem>>, %arg2: memref<288x128xbf16, #tpu.memory_space<vmem>>, %arg3: memref<128x128xbf16, #tpu.memory_space<vmem>>, %arg4: memref<32x128xf32, #tpu.memory_space<vmem>>, %arg5: memref<32x128xf32, #tpu.memory_space<vmem>>) attributes {dimension_semantics = [#tpu.dimension_semantics<parallel>], iteration_bounds = array<i64: 1>, scalar_prefetch = 0 : i64, scratch_operands = 0 : i64, tpu.core_type = #tpu.core_type<tc>, window_params = [{transform_indices = @transform_0, window_bounds = array<i64: 32, 288>}, {pipeline_mode = #tpu.pipeline_mode<synchronous>, transform_indices = @transform_1, window_bounds = array<i64: 288, 128>}, {pipeline_mode = #tpu.pipeline_mode<synchronous>, transform_indices = @transform_2, window_bounds = array<i64: 128, 128>}, {transform_indices = @transform_3, window_bounds = array<i64: 32, 128>}, {transform_indices = @transform_4, window_bounds = array<i64: 32, 128>}]} {
    %c0 = arith.constant 0 : index
    %c0_0 = arith.constant 0 : index
    %0 = vector.load %arg1[%c0, %c0_0] : memref<32x288xbf16, #tpu.memory_space<vmem>>, vector<32x288xbf16>
    %cst = arith.constant 0.000000e+00 : bf16
    %1 = vector.broadcast %cst : bf16 to vector<32x288xbf16>
    %2 = arith.maximumf %0, %1 : vector<32x288xbf16>
    %c0_1 = arith.constant 0 : index
    %c0_2 = arith.constant 0 : index
    %3 = vector.load %arg2[%c0_1, %c0_2] : memref<288x128xbf16, #tpu.memory_space<vmem>>, vector<288x128xbf16>
    %cst_3 = arith.constant dense<0.000000e+00> : vector<32x128xf32>
    %4 = tpu.matmul %2, %3, %cst_3 {dimension_numbers = #tpu.dot_dimension_numbers<[1], [0], [0], [1], [0, 0, 1, 1], [], []>} : vector<32x288xbf16>, vector<288x128xbf16>, vector<32x128xf32> -> vector<32x128xf32>
    %cst_4 = arith.constant 0.000000e+00 : f32
    %5 = vector.broadcast %cst_4 : f32 to vector<32x128xf32>
    %6 = arith.maximumf %4, %5 : vector<32x128xf32>
    %7 = arith.truncf %6 : vector<32x128xf32> to vector<32x128xbf16>
    %c0_5 = arith.constant 0 : index
    %c0_6 = arith.constant 0 : index
    %8 = vector.load %arg3[%c0_5, %c0_6] : memref<128x128xbf16, #tpu.memory_space<vmem>>, vector<128x128xbf16>
    %cst_7 = arith.constant dense<0.000000e+00> : vector<32x128xf32>
    %9 = tpu.matmul %7, %8, %cst_7 {dimension_numbers = #tpu.dot_dimension_numbers<[1], [0], [0], [1], [0, 0, 1, 1], [], []>} : vector<32x128xbf16>, vector<128x128xbf16>, vector<32x128xf32> -> vector<32x128xf32>
    %c0_8 = arith.constant 0 : index
    %c0_9 = arith.constant 0 : index
    %10 = vector.load %arg4[%c0_8, %c0_9] : memref<32x128xf32, #tpu.memory_space<vmem>>, vector<32x128xf32>
    %11 = arith.addf %9, %10 : vector<32x128xf32>
    %cst_10 = arith.constant 0.000000e+00 : f32
    %12 = vector.broadcast %cst_10 : f32 to vector<32x128xf32>
    %13 = arith.maximumf %11, %12 : vector<32x128xf32>
    %c0_11 = arith.constant 0 : index
    %c0_12 = arith.constant 0 : index
    %14 = vector.load %arg5[%c0_11, %c0_12] : memref<32x128xf32, #tpu.memory_space<vmem>>, vector<32x128xf32>
    tpu.vector_store %arg5[%c0_11, %c0_12], %13 {strides = array<i32>} : memref<32x128xf32, #tpu.memory_space<vmem>>, vector<32x128xf32>,
    return
  }
  func.func @transform_0(%arg0: i32) -> (i32, i32) {
    %c0_i32 = arith.constant 0 : i32
    %c0_i32_0 = arith.constant 0 : i32
    return %arg0, %c0_i32 : i32, i32
  }
  func.func @transform_1(%arg0: i32) -> (i32, i32) {
    %c0_i32 = arith.constant 0 : i32
    %c0_i32_0 = arith.constant 0 : i32
    %c0_i32_1 = arith.constant 0 : i32
    return %c0_i32, %c0_i32_0 : i32, i32
  }
  func.func @transform_2(%arg0: i32) -> (i32, i32) {
    %c0_i32 = arith.constant 0 : i32
    %c0_i32_0 = arith.constant 0 : i32
    %c0_i32_1 = arith.constant 0 : i32
    return %c0_i32, %c0_i32_0 : i32, i32
  }
  func.func @transform_3(%arg0: i32) -> (i32, i32) {
    %c0_i32 = arith.constant 0 : i32
    %c0_i32_0 = arith.constant 0 : i32
    return %arg0, %c0_i32 : i32, i32
  }
  func.func @transform_4(%arg0: i32) -> (i32, i32) {
    %c0_i32 = arith.constant 0 : i32
    %c0_i32_0 = arith.constant 0 : i32
    return %arg0, %c0_i32 : i32, i32
  }
}

module attributes {stable_mosaic.version = 11 : i64} {
  func.func @_fused_kernel(%arg0: i32, %arg1: memref<32x288xbf16, #tpu.memory_space<vmem>>, %arg2: memref<288x128xbf16, #tpu.memory_space<vmem>>, %arg3: memref<1x128xf32, #tpu.memory_space<vmem>>, %arg4: memref<32x128xf32, #tpu.memory_space<vmem>>) attributes {dimension_semantics = [#tpu.dimension_semantics<parallel>], iteration_bounds = array<i64: 1>, scalar_prefetch = 0 : i64, scratch_operands = 0 : i64, tpu.core_type = #tpu.core_type<tc>, window_params = [{transform_indices = @transform_0, window_bounds = array<i64: 32, 288>}, {pipeline_mode = #tpu.pipeline_mode<synchronous>, transform_indices = @transform_1, window_bounds = array<i64: 288, 128>}, {pipeline_mode = #tpu.pipeline_mode<synchronous>, transform_indices = @transform_2, window_bounds = array<i64: 1, 128>}, {transform_indices = @transform_3, window_bounds = array<i64: 32, 128>}]} {
    %c0 = arith.constant 0 : index
    %c0_0 = arith.constant 0 : index
    %0 = vector.load %arg1[%c0, %c0_0] : memref<32x288xbf16, #tpu.memory_space<vmem>>, vector<32x288xbf16>
    %c0_1 = arith.constant 0 : index
    %c0_2 = arith.constant 0 : index
    %1 = vector.load %arg2[%c0_1, %c0_2] : memref<288x128xbf16, #tpu.memory_space<vmem>>, vector<288x128xbf16>
    %cst = arith.constant dense<0.000000e+00> : vector<32x128xf32>
    %2 = tpu.matmul %0, %1, %cst {dimension_numbers = #tpu.dot_dimension_numbers<[1], [0], [0], [1], [0, 0, 1, 1], [], []>} : vector<32x288xbf16>, vector<288x128xbf16>, vector<32x128xf32> -> vector<32x128xf32>
    %c0_3 = arith.constant 0 : index
    %c0_4 = arith.constant 0 : index
    %3 = vector.load %arg3[%c0_3, %c0_4] : memref<1x128xf32, #tpu.memory_space<vmem>>, vector<1x128xf32>
    %4 = vector.broadcast %3 : vector<1x128xf32> to vector<32x128xf32>
    %5 = arith.addf %2, %4 : vector<32x128xf32>
    %c0_5 = arith.constant 0 : index
    %c0_6 = arith.constant 0 : index
    %6 = vector.load %arg4[%c0_5, %c0_6] : memref<32x128xf32, #tpu.memory_space<vmem>>, vector<32x128xf32>
    tpu.vector_store %arg4[%c0_5, %c0_6], %5 {strides = array<i32>} : memref<32x128xf32, #tpu.memory_space<vmem>>, vector<32x128xf32>,
    return
  }
  func.func @transform_0(%arg0: i32) -> (i32, i32) {
    %c0_i32 = arith.constant 0 : i32
    %c0_i32_0 = arith.constant 0 : i32
    return %arg0, %c0_i32 : i32, i32
  }
  func.func @transform_1(%arg0: i32) -> (i32, i32) {
    %c0_i32 = arith.constant 0 : i32
    %c0_i32_0 = arith.constant 0 : i32
    %c0_i32_1 = arith.constant 0 : i32
    return %c0_i32, %c0_i32_0 : i32, i32
  }
  func.func @transform_2(%arg0: i32) -> (i32, i32) {
    %c0_i32 = arith.constant 0 : i32
    %c0_i32_0 = arith.constant 0 : i32
    %c0_i32_1 = arith.constant 0 : i32
    return %c0_i32, %c0_i32_0 : i32, i32
  }
  func.func @transform_3(%arg0: i32) -> (i32, i32) {
    %c0_i32 = arith.constant 0 : i32
    %c0_i32_0 = arith.constant 0 : i32
    return %arg0, %c0_i32 : i32, i32
  }
}

</mosaic_0001>

<llo_original>
// kernel: encoder_forward.5
$region0: #{encoder_forward.5}
  #allocation0 [shape = 'u32[]', space=smem, size = 0x4, offset = 0x4, fixed_abs, tag = 'smem constant byte address 0x4 - core index']
  #allocation1 [shape = 'u32[144,128]{1,0:T(1,128)}', space=vmem, size = 0x12000, scoped, tag = 'internal scratch']
  %s0 = inlined_call_operand.vmem [shape: bf16[128,64], index: 0, kind: input, shape index: {}]
  %s1 = inlined_call_operand.vmem [shape: bf16[64,128], index: 1, kind: input, shape index: {}]
  %s2 = inlined_call_operand.vmem [shape: f32[1,128], index: 2, kind: input, shape index: {}]
  %s3 = inlined_call_operand.vmem [shape: f32[128,128], index: 3, kind: output, shape index: {}]
  %s4 = sld [smem:[#allocation0]]
  $region22: #{encoder_forward.5} parent=0
    _
  %s6 = ssub.s32 1, %s4
  %s7 = scalar_select 0, %s6, %s4
  // Predicated region
  $region2: #{encoder_forward.5} parent=0 // pred_check
    _
  $region3: #{encoder_forward.5} parent=0 // pred_check_branch
    %9 = sbr.rel (0) target = $region5
  $region4: #{encoder_forward.5} parent=0 // pred_region
    _
  $region5: #{encoder_forward.5} parent=0 // pred_fallthru
    _
  // Predicated region
  $region6: #{encoder_forward.5} parent=0 // pred_check
    _
  $region7: #{encoder_forward.5} parent=0 // pred_check_branch
    %11 = sbr.rel (0) target = $region9
  $region8: #{encoder_forward.5} parent=0 // pred_region
    _
  $region9: #{encoder_forward.5} parent=0 // pred_fallthru
    _
  // Predicated region
  $region10: #{encoder_forward.5} parent=0 // pred_check
    _
  $region11: #{encoder_forward.5} parent=0 // pred_check_branch
    %13 = sbr.rel (0) target = $region13
  $region12: #{encoder_forward.5} parent=0 // pred_region
    _
  $region13: #{encoder_forward.5} parent=0 // pred_fallthru
    _
  %v15 = vld [vmem:[%s0] sm:$0xf]
  %v16 = vld [vmem:[%s0 + $0x4] sm:$0xf]
  %v17 = vld [vmem:[%s0 + $0x8] sm:$0xf]
  %v18 = vld [vmem:[%s0 + $0xc] sm:$0xf]
  %v19 = vld [vmem:[%s0 + $0x10] sm:$0xf]
  %v20 = vld [vmem:[%s0 + $0x14] sm:$0xf]
  %v21 = vld [vmem:[%s0 + $0x18] sm:$0xf]
  %v22 = vld [vmem:[%s0 + $0x1c] sm:$0xf]
  %v23 = vld [vmem:[%s0 + $0x20] sm:$0xf]
  %v24 = vld [vmem:[%s0 + $0x24] sm:$0xf]
  %v25 = vld [vmem:[%s0 + $0x28] sm:$0xf]
  %v26 = vld [vmem:[%s0 + $0x2c] sm:$0xf]
  %v27 = vld [vmem:[%s0 + $0x30] sm:$0xf]
  %v28 = vld [vmem:[%s0 + $0x34] sm:$0xf]
  %v29 = vld [vmem:[%s0 + $0x38] sm:$0xf]
  %v30 = vld [vmem:[%s0 + $0x3c] sm:$0xf]
  %v31 = vld [vmem:[%s1] sm:$0xf]
  %v32 = vld [vmem:[%s1 + $0x4] sm:$0xf]
  %v33 = vld [vmem:[%s1 + $0x8] sm:$0xf]
  %v34 = vld [vmem:[%s1 + $0xc] sm:$0xf]
  %v35 = vld [vmem:[%s1 + $0x10] sm:$0xf]
  %v36 = vld [vmem:[%s1 + $0x14] sm:$0xf]
  %v37 = vld [vmem:[%s1 + $0x18] sm:$0xf]
  %v38 = vld [vmem:[%s1 + $0x1c] sm:$0xf]
  %v39 = vld [vmem:[%s2] sm:$0x1]
  %v41 = vlaneseq
  %v42 = vshrl.u32 %v41, 7
  %v43 = vsub.s32 0, %v42
  %v44 = vrot.slane %v39, %v43
  %v62 = vunpack.c.l.b16 %v15
  %v63 = vunpack.c.l.b16 %v16
  %v64 = vunpack.c.l.b16 %v17
  %v65 = vunpack.c.l.b16 %v18
  %v66 = vunpack.c.l.b16 %v19
  %v67 = vunpack.c.l.b16 %v20
  %v68 = vunpack.c.l.b16 %v21
  %v69 = vunpack.c.l.b16 %v22
  %v70 = vunpack.c.l.b16 %v23
  %v71 = vunpack.c.l.b16 %v24
  %v72 = vunpack.c.l.b16 %v25
  %v73 = vunpack.c.l.b16 %v26
  %v74 = vunpack.c.l.b16 %v27
  %v75 = vunpack.c.l.b16 %v28
  %v76 = vunpack.c.l.b16 %v29
  %v77 = vunpack.c.l.b16 %v30
  %v78 = vpack.c.b16 %v63, %v62
  %v79 = vpack.c.b16 %v65, %v64
  %v80 = vpack.c.b16 %v67, %v66
  %v81 = vpack.c.b16 %v69, %v68
  %v82 = vpack.c.b16 %v71, %v70
  %v83 = vpack.c.b16 %v73, %v72
  %v84 = vpack.c.b16 %v75, %v74
  %v85 = vpack.c.b16 %v77, %v76
  %v94 = vunpack.c.l.b16 %v31
  %v95 = vunpack.c.l.b16 %v32
  %v96 = vunpack.c.l.b16 %v33
  %v97 = vunpack.c.l.b16 %v34
  %v98 = vunpack.c.l.b16 %v35
  %v99 = vunpack.c.l.b16 %v36
  %v100 = vunpack.c.l.b16 %v37
  %v101 = vunpack.c.l.b16 %v38
  %v102 = vpack.c.b16 %v95, %v94
  %v103 = vpack.c.b16 %v97, %v96
  %v104 = vpack.c.b16 %v99, %v98
  %v105 = vpack.c.b16 %v101, %v100
  %vm110 = vcmask 523264
  %v112 = vsel %vm110, %v78, 0
  %v115 = vsel %vm110, %v79, 0
  %v118 = vsel %vm110, %v80, 0
  %v121 = vsel %vm110, %v81, 0
  %v124 = vsel %vm110, %v82, 0
  %v127 = vsel %vm110, %v83, 0
  %v130 = vsel %vm110, %v84, 0
  %v133 = vsel %vm110, %v85, 0
  %135 = vmatprep.subr.bf16.mxu0 0
  %136 = vmatpush1.bf16.msra.mxu0 0
  %137 = vmatprep.subr.bf16.mxu0 0
  %138 = vmatpush1.bf16.msra.mxu0 0
  %139 = vmatprep.subr.bf16.mxu0 0
  %140 = vmatpush1.bf16.msra.mxu0 0
  %141 = vmatprep.subr.bf16.mxu0 0
  %142 = vmatpush1.bf16.msra.mxu0 0
  %143 = vmatprep.subr.bf16.mxu0 0
  %144 = vmatpush1.bf16.msra.mxu0 %v105
  %145 = vmatprep.subr.bf16.mxu0 0
  %146 = vmatpush1.bf16.msra.mxu0 %v104
  %147 = vmatprep.subr.bf16.mxu0 0
  %148 = vmatpush1.bf16.msra.mxu0 %v103
  %149 = vmatprep.subr.bf16.mxu0 0
  %150 = vmatpush1.bf16.msra.mxu0 %v102
  %151 = vmatprep.subr.bf16.mxu0 0
  %152 = vmatpush2.bf16.msra.mxu0 0
  %153 = vmatprep.subr.bf16.mxu0 0
  %154 = vmatpush2.bf16.msra.mxu0 0
  %155 = vmatprep.subr.bf16.mxu0 0
  %156 = vmatpush2.bf16.msra.mxu0 0
  %157 = vmatprep.subr.bf16.mxu0 0
  %158 = vmatpush2.bf16.msra.mxu0 0
  %159 = vmatprep.subr.bf16.mxu0 0
  %160 = vmatpush2.bf16.msra.mxu0 0
  %161 = vmatprep.subr.bf16.mxu0 0
  %162 = vmatpush2.bf16.msra.mxu0 0
  %163 = vmatprep.subr.bf16.mxu0 0
  %164 = vmatpush2.bf16.msra.mxu0 0
  %165 = vmatprep.subr.bf16.mxu0 0
  %166 = vmatpush2.bf16.msra.mxu0 0
  %167 = vmatprep.mubr.bf16.mxu0 0
  %168 = vmatmul.mubr.bf16.gmra.mxu0 %v112
  %v169 = vpop.f32.mrf.mxu0
  %v170 = vadd.f32 %v44, %v169
  %v171 = vpop.f32.mrf.mxu0
  %v172 = vpop.f32.mrf.mxu0
  %v173 = vadd.f32 %v44, %v172
  %v174 = vpop.f32.mrf.mxu0
  %175 = vmatprep.mubr.bf16.mxu0 0
  %176 = vmatmul.mubr.bf16.gmra.mxu0 %v115
  %v177 = vpop.f32.mrf.mxu0
  %v178 = vadd.f32 %v44, %v177
  %v179 = vpop.f32.mrf.mxu0
  %v180 = vpop.f32.mrf.mxu0
  %v181 = vadd.f32 %v44, %v180
  %v182 = vpop.f32.mrf.mxu0
  %183 = vmatprep.mubr.bf16.mxu0 0
  %184 = vmatmul.mubr.bf16.gmra.mxu0 %v118
  %v185 = vpop.f32.mrf.mxu0
  %v186 = vadd.f32 %v44, %v185
  %v187 = vpop.f32.mrf.mxu0
  %v188 = vpop.f32.mrf.mxu0
  %v189 = vadd.f32 %v44, %v188
  %v190 = vpop.f32.mrf.mxu0
  %191 = vmatprep.mubr.bf16.mxu0 0
  %192 = vmatmul.mubr.bf16.gmra.mxu0 %v121
  %v193 = vpop.f32.mrf.mxu0
  %v194 = vadd.f32 %v44, %v193
  %v195 = vpop.f32.mrf.mxu0
  %v196 = vpop.f32.mrf.mxu0
  %v197 = vadd.f32 %v44, %v196
  %v198 = vpop.f32.mrf.mxu0
  %199 = vmatprep.mubr.bf16.mxu0 0
  %200 = vmatmul.mubr.bf16.gmra.mxu0 %v124
  %v201 = vpop.f32.mrf.mxu0
  %v202 = vadd.f32 %v44, %v201
  %v203 = vpop.f32.mrf.mxu0
  %v204 = vpop.f32.mrf.mxu0
  %v205 = vadd.f32 %v44, %v204
  %v206 = vpop.f32.mrf.mxu0
  %207 = vmatprep.mubr.bf16.mxu0 0
  %208 = vmatmul.mubr.bf16.gmra.mxu0 %v127
  %v209 = vpop.f32.mrf.mxu0
  %v210 = vadd.f32 %v44, %v209
  %v211 = vpop.f32.mrf.mxu0
  %v212 = vpop.f32.mrf.mxu0
  %v213 = vadd.f32 %v44, %v212
  %v214 = vpop.f32.mrf.mxu0
  %215 = vmatprep.mubr.bf16.mxu0 0
  %216 = vmatmul.mubr.bf16.gmra.mxu0 %v130
  %v217 = vpop.f32.mrf.mxu0
  %v218 = vadd.f32 %v44, %v217
  %v219 = vpop.f32.mrf.mxu0
  %v220 = vpop.f32.mrf.mxu0
  %v221 = vadd.f32 %v44, %v220
  %v222 = vpop.f32.mrf.mxu0
  %223 = vmatprep.mubr.bf16.mxu0 0
  %224 = vmatmul.mubr.bf16.gmra.mxu0 %v133
  %v225 = vpop.f32.mrf.mxu0
  %v226 = vadd.f32 %v44, %v225
  %v227 = vpop.f32.mrf.mxu0
  %v228 = vpop.f32.mrf.mxu0
  %v229 = vadd.f32 %v44, %v228
  %v230 = vpop.f32.mrf.mxu0
  %231 = vdwg.mxu0
  %v232 = vmax.f32 %v170, 0.0
  %v233 = vmax.f32 %v173, 0.0
  %v234 = vmax.f32 %v178, 0.0
  %v235 = vmax.f32 %v181, 0.0
  %v236 = vmax.f32 %v186, 0.0
  %v237 = vmax.f32 %v189, 0.0
  %v238 = vmax.f32 %v194, 0.0
  %v239 = vmax.f32 %v197, 0.0
  %v240 = vmax.f32 %v202, 0.0
  %v241 = vmax.f32 %v205, 0.0
  %v242 = vmax.f32 %v210, 0.0
  %v243 = vmax.f32 %v213, 0.0
  %v244 = vmax.f32 %v218, 0.0
  %v245 = vmax.f32 %v221, 0.0
  %v246 = vmax.f32 %v226, 0.0
  %v247 = vmax.f32 %v229, 0.0
  %248 = vst [vmem:[%s3] sm:$0xff] %v232
  %249 = vst [vmem:[%s3 + $0x8] sm:$0xff] %v233
  %250 = vst [vmem:[%s3 + $0x10] sm:$0xff] %v234
  %251 = vst [vmem:[%s3 + $0x18] sm:$0xff] %v235
  %252 = vst [vmem:[%s3 + $0x20] sm:$0xff] %v236
  %253 = vst [vmem:[%s3 + $0x28] sm:$0xff] %v237
  %254 = vst [vmem:[%s3 + $0x30] sm:$0xff] %v238
  %255 = vst [vmem:[%s3 + $0x38] sm:$0xff] %v239
  %256 = vst [vmem:[%s3 + $0x40] sm:$0xff] %v240
  %257 = vst [vmem:[%s3 + $0x48] sm:$0xff] %v241
  %258 = vst [vmem:[%s3 + $0x50] sm:$0xff] %v242
  %259 = vst [vmem:[%s3 + $0x58] sm:$0xff] %v243
  %260 = vst [vmem:[%s3 + $0x60] sm:$0xff] %v244
  %261 = vst [vmem:[%s3 + $0x68] sm:$0xff] %v245
  %262 = vst [vmem:[%s3 + $0x70] sm:$0xff] %v246
  %263 = vst [vmem:[%s3 + $0x78] sm:$0xff] %v247
  // Predicated region
  $region14: #{encoder_forward.5} parent=0 // pred_check
    _
  $region15: #{encoder_forward.5} parent=0 // pred_check_branch
    %265 = sbr.rel (0) target = $region17
  $region16: #{encoder_forward.5} parent=0 // pred_region
    _
  $region17: #{encoder_forward.5} parent=0 // pred_fallthru
    _
  // Predicated region
  $region18: #{encoder_forward.5} parent=0 // pred_check
    _
  $region19: #{encoder_forward.5} parent=0 // pred_check_branch
    %267 = sbr.rel (0) target = $region21
  $region20: #{encoder_forward.5} parent=0 // pred_region
    _
  $region21: #{encoder_forward.5} parent=0 // pred_fallthru
    _

// kernel: encoder_forward.6
$region0: #{encoder_forward.6}
  #allocation0 [shape = 'u32[]', space=smem, size = 0x4, offset = 0x4, fixed_abs, tag = 'smem constant byte address 0x4 - core index']
  #allocation1 [shape = 'u32[144,128]{1,0:T(1,128)}', space=vmem, size = 0x12000, scoped, tag = 'internal scratch']
  %s0 = inlined_call_operand.vmem [shape: bf16[32,256], index: 0, kind: input, shape index: {}]
  %s1 = inlined_call_operand.vmem [shape: bf16[256,128], index: 1, kind: input, shape index: {}]
  %s2 = inlined_call_operand.vmem [shape: f32[1,128], index: 2, kind: input, shape index: {}]
  %s3 = inlined_call_operand.vmem [shape: f32[32,128], index: 3, kind: output, shape index: {}]
  %s4 = sld [smem:[#allocation0]]
  $region22: #{encoder_forward.6} parent=0
    _
  %s6 = ssub.s32 1, %s4
  %s7 = scalar_select 0, %s6, %s4
  // Predicated region
  $region2: #{encoder_forward.6} parent=0 // pred_check
    _
  $region3: #{encoder_forward.6} parent=0 // pred_check_branch
    %9 = sbr.rel (0) target = $region5
  $region4: #{encoder_forward.6} parent=0 // pred_region
    _
  $region5: #{encoder_forward.6} parent=0 // pred_fallthru
    _
  // Predicated region
  $region6: #{encoder_forward.6} parent=0 // pred_check
    _
  $region7: #{encoder_forward.6} parent=0 // pred_check_branch
    %11 = sbr.rel (0) target = $region9
  $region8: #{encoder_forward.6} parent=0 // pred_region
    _
  $region9: #{encoder_forward.6} parent=0 // pred_fallthru
    _
  // Predicated region
  $region10: #{encoder_forward.6} parent=0 // pred_check
    _
  $region11: #{encoder_forward.6} parent=0 // pred_check_branch
    %13 = sbr.rel (0) target = $region13
  $region12: #{encoder_forward.6} parent=0 // pred_region
    _
  $region13: #{encoder_forward.6} parent=0 // pred_fallthru
    _
  %v15 = vld [vmem:[%s0] sm:$0xff]
  %v16 = vld [vmem:[%s0 + $0x8] sm:$0xff]
  %v17 = vld [vmem:[%s0 + $0x10] sm:$0xff]
  %v18 = vld [vmem:[%s0 + $0x18] sm:$0xff]
  %v19 = vld [vmem:[%s1] sm:$0xf]
  %v20 = vld [vmem:[%s1 + $0x4] sm:$0xf]
  %v21 = vld [vmem:[%s1 + $0x8] sm:$0xf]
  %v22 = vld [vmem:[%s1 + $0xc] sm:$0xf]
  %v23 = vld [vmem:[%s1 + $0x10] sm:$0xf]
  %v24 = vld [vmem:[%s1 + $0x14] sm:$0xf]
  %v25 = vld [vmem:[%s1 + $0x18] sm:$0xf]
  %v26 = vld [vmem:[%s1 + $0x1c] sm:$0xf]
  %v27 = vld [vmem:[%s1 + $0x20] sm:$0xf]
  %v28 = vld [vmem:[%s1 + $0x24] sm:$0xf]
  %v29 = vld [vmem:[%s1 + $0x28] sm:$0xf]
  %v30 = vld [vmem:[%s1 + $0x2c] sm:$0xf]
  %v31 = vld [vmem:[%s1 + $0x30] sm:$0xf]
  %v32 = vld [vmem:[%s1 + $0x34] sm:$0xf]
  %v33 = vld [vmem:[%s1 + $0x38] sm:$0xf]
  %v34 = vld [vmem:[%s1 + $0x3c] sm:$0xf]
  %v35 = vld [vmem:[%s1 + $0x40] sm:$0xf]
  %v36 = vld [vmem:[%s1 + $0x44] sm:$0xf]
  %v37 = vld [vmem:[%s1 + $0x48] sm:$0xf]
  %v38 = vld [vmem:[%s1 + $0x4c] sm:$0xf]
  %v39 = vld [vmem:[%s1 + $0x50] sm:$0xf]
  %v40 = vld [vmem:[%s1 + $0x54] sm:$0xf]
  %v41 = vld [vmem:[%s1 + $0x58] sm:$0xf]
  %v42 = vld [vmem:[%s1 + $0x5c] sm:$0xf]
  %v43 = vld [vmem:[%s1 + $0x60] sm:$0xf]
  %v44 = vld [vmem:[%s1 + $0x64] sm:$0xf]
  %v45 = vld [vmem:[%s1 + $0x68] sm:$0xf]
  %v46 = vld [vmem:[%s1 + $0x6c] sm:$0xf]
  %v47 = vld [vmem:[%s1 + $0x70] sm:$0xf]
  %v48 = vld [vmem:[%s1 + $0x74] sm:$0xf]
  %v49 = vld [vmem:[%s1 + $0x78] sm:$0xf]
  %v50 = vld [vmem:[%s1 + $0x7c] sm:$0xf]
  %v51 = vld [vmem:[%s2] sm:$0x1]
  %v53 = vlaneseq
  %v54 = vshrl.u32 %v53, 7
  %v55 = vsub.s32 0, %v54
  %v56 = vrot.slane %v51, %v55
  %v62 = vunpack.c.l.b16 %v15
  %v63 = vunpack.c.h.b16 %v15
  %v64 = vunpack.c.l.b16 %v16
  %v65 = vunpack.c.h.b16 %v16
  %v66 = vunpack.c.l.b16 %v17
  %v67 = vunpack.c.h.b16 %v17
  %v68 = vunpack.c.l.b16 %v18
  %v69 = vunpack.c.h.b16 %v18
  %v70 = vpack.c.b16 %v64, %v62
  %v71 = vpack.c.b16 %v65, %v63
  %v72 = vpack.c.b16 %v68, %v66
  %v73 = vpack.c.b16 %v69, %v67
  %v110 = vunpack.c.l.b16 %v19
  %v111 = vunpack.c.l.b16 %v20
  %v112 = vunpack.c.l.b16 %v21
  %v113 = vunpack.c.l.b16 %v22
  %v114 = vunpack.c.l.b16 %v23
  %v115 = vunpack.c.l.b16 %v24
  %v116 = vunpack.c.l.b16 %v25
  %v117 = vunpack.c.l.b16 %v26
  %v118 = vunpack.c.l.b16 %v27
  %v119 = vunpack.c.l.b16 %v28
  %v120 = vunpack.c.l.b16 %v29
  %v121 = vunpack.c.l.b16 %v30
  %v122 = vunpack.c.l.b16 %v31
  %v123 = vunpack.c.l.b16 %v32
  %v124 = vunpack.c.l.b16 %v33
  %v125 = vunpack.c.l.b16 %v34
  %v126 = vunpack.c.l.b16 %v35
  %v127 = vunpack.c.l.b16 %v36
  %v128 = vunpack.c.l.b16 %v37
  %v129 = vunpack.c.l.b16 %v38
  %v130 = vunpack.c.l.b16 %v39
  %v131 = vunpack.c.l.b16 %v40
  %v132 = vunpack.c.l.b16 %v41
  %v133 = vunpack.c.l.b16 %v42
  %v134 = vunpack.c.l.b16 %v43
  %v135 = vunpack.c.l.b16 %v44
  %v136 = vunpack.c.l.b16 %v45
  %v137 = vunpack.c.l.b16 %v46
  %v138 = vunpack.c.l.b16 %v47
  %v139 = vunpack.c.l.b16 %v48
  %v140 = vunpack.c.l.b16 %v49
  %v141 = vunpack.c.l.b16 %v50
  %v142 = vpack.c.b16 %v111, %v110
  %v143 = vpack.c.b16 %v113, %v112
  %v144 = vpack.c.b16 %v115, %v114
  %v145 = vpack.c.b16 %v117, %v116
  %v146 = vpack.c.b16 %v119, %v118
  %v147 = vpack.c.b16 %v121, %v120
  %v148 = vpack.c.b16 %v123, %v122
  %v149 = vpack.c.b16 %v125, %v124
  %v150 = vpack.c.b16 %v127, %v126
  %v151 = vpack.c.b16 %v129, %v128
  %v152 = vpack.c.b16 %v131, %v130
  %v153 = vpack.c.b16 %v133, %v132
  %v154 = vpack.c.b16 %v135, %v134
  %v155 = vpack.c.b16 %v137, %v136
  %v156 = vpack.c.b16 %v139, %v138
  %v157 = vpack.c.b16 %v141, %v140
  %174 = vmatprep.subr.bf16.mxu0 0
  %175 = vmatpush1.bf16.msra.mxu0 %v149
  %176 = vmatprep.subr.bf16.mxu0 0
  %177 = vmatpush1.bf16.msra.mxu0 %v148
  %178 = vmatprep.subr.bf16.mxu0 0
  %179 = vmatpush1.bf16.msra.mxu0 %v147
  %180 = vmatprep.subr.bf16.mxu0 0
  %181 = vmatpush1.bf16.msra.mxu0 %v146
  %182 = vmatprep.subr.bf16.mxu0 0
  %183 = vmatpush1.bf16.msra.mxu0 %v145
  %184 = vmatprep.subr.bf16.mxu0 0
  %185 = vmatpush1.bf16.msra.mxu0 %v144
  %186 = vmatprep.subr.bf16.mxu0 0
  %187 = vmatpush1.bf16.msra.mxu0 %v143
  %188 = vmatprep.subr.bf16.mxu0 0
  %189 = vmatpush1.bf16.msra.mxu0 %v142
  %190 = vmatprep.subr.bf16.mxu0 0
  %191 = vmatpush2.bf16.msra.mxu0 %v157
  %192 = vmatprep.subr.bf16.mxu0 0
  %193 = vmatpush2.bf16.msra.mxu0 %v156
  %194 = vmatprep.subr.bf16.mxu0 0
  %195 = vmatpush2.bf16.msra.mxu0 %v155
  %196 = vmatprep.subr.bf16.mxu0 0
  %197 = vmatpush2.bf16.msra.mxu0 %v154
  %198 = vmatprep.subr.bf16.mxu0 0
  %199 = vmatpush2.bf16.msra.mxu0 %v153
  %200 = vmatprep.subr.bf16.mxu0 0
  %201 = vmatpush2.bf16.msra.mxu0 %v152
  %202 = vmatprep.subr.bf16.mxu0 0
  %203 = vmatpush2.bf16.msra.mxu0 %v151
  %204 = vmatprep.subr.bf16.mxu0 0
  %205 = vmatpush2.bf16.msra.mxu0 %v150
  %206 = vmatprep.mubr.bf16.mxu0 %v71
  %207 = vmatmul.mubr.bf16.gmra.mxu0 %v70
  %v208 = vpop.f32.mrf.mxu0
  %v209 = vadd.f32 %v56, %v208
  %v210 = vpop.f32.mrf.mxu0
  %v211 = vpop.f32.mrf.mxu0
  %v212 = vadd.f32 %v56, %v211
  %v213 = vpop.f32.mrf.mxu0
  %214 = vmatprep.mubr.bf16.mxu0 %v73
  %215 = vmatmul.mubr.bf16.gmra.mxu0 %v72
  %v216 = vpop.f32.mrf.mxu0
  %v217 = vadd.f32 %v56, %v216
  %v218 = vpop.f32.mrf.mxu0
  %v219 = vpop.f32.mrf.mxu0
  %v220 = vadd.f32 %v56, %v219
  %v221 = vpop.f32.mrf.mxu0
  %222 = vdwg.mxu0
  %v223 = vmax.f32 %v209, 0.0
  %v224 = vmax.f32 %v212, 0.0
  %v225 = vmax.f32 %v217, 0.0
  %v226 = vmax.f32 %v220, 0.0
  %227 = vst [vmem:[%s3] sm:$0xff] %v223
  %228 = vst [vmem:[%s3 + $0x8] sm:$0xff] %v224
  %229 = vst [vmem:[%s3 + $0x10] sm:$0xff] %v225
  %230 = vst [vmem:[%s3 + $0x18] sm:$0xff] %v226
  // Predicated region
  $region14: #{encoder_forward.6} parent=0 // pred_check
    _
  $region15: #{encoder_forward.6} parent=0 // pred_check_branch
    %232 = sbr.rel (0) target = $region17
  $region16: #{encoder_forward.6} parent=0 // pred_region
    _
  $region17: #{encoder_forward.6} parent=0 // pred_fallthru
    _
  // Predicated region
  $region18: #{encoder_forward.6} parent=0 // pred_check
    _
  $region19: #{encoder_forward.6} parent=0 // pred_check_branch
    %234 = sbr.rel (0) target = $region21
  $region20: #{encoder_forward.6} parent=0 // pred_region
    _
  $region21: #{encoder_forward.6} parent=0 // pred_fallthru
    _

// kernel: encoder_forward.8
$region0: #{encoder_forward.8}
  #allocation0 [shape = 'u32[]', space=smem, size = 0x4, offset = 0x4, fixed_abs, tag = 'smem constant byte address 0x4 - core index']
  #allocation1 [shape = 'u32[144,128]{1,0:T(1,128)}', space=vmem, size = 0x12000, scoped, tag = 'internal scratch']
  %s0 = inlined_call_operand.vmem [shape: bf16[32,288], index: 0, kind: input, shape index: {}]
  %s1 = inlined_call_operand.vmem [shape: bf16[288,128], index: 1, kind: input, shape index: {}]
  %s2 = inlined_call_operand.vmem [shape: bf16[128,128], index: 2, kind: input, shape index: {}]
  %s3 = inlined_call_operand.vmem [shape: f32[32,128], index: 3, kind: input, shape index: {}]
  %s4 = inlined_call_operand.vmem [shape: f32[32,128], index: 4, kind: output, shape index: {}]
  %s5 = sld [smem:[#allocation0]]
  $region26: #{encoder_forward.8} parent=0
    _
  %s7 = ssub.s32 1, %s5
  %s8 = scalar_select 0, %s7, %s5
  // Predicated region
  $region2: #{encoder_forward.8} parent=0 // pred_check
    _
  $region3: #{encoder_forward.8} parent=0 // pred_check_branch
    %10 = sbr.rel (0) target = $region5
  $region4: #{encoder_forward.8} parent=0 // pred_region
    _
  $region5: #{encoder_forward.8} parent=0 // pred_fallthru
    _
  // Predicated region
  $region6: #{encoder_forward.8} parent=0 // pred_check
    _
  $region7: #{encoder_forward.8} parent=0 // pred_check_branch
    %12 = sbr.rel (0) target = $region9
  $region8: #{encoder_forward.8} parent=0 // pred_region
    _
  $region9: #{encoder_forward.8} parent=0 // pred_fallthru
    _
  // Predicated region
  $region10: #{encoder_forward.8} parent=0 // pred_check
    _
  $region11: #{encoder_forward.8} parent=0 // pred_check_branch
    %14 = sbr.rel (0) target = $region13
  $region12: #{encoder_forward.8} parent=0 // pred_region
    _
  $region13: #{encoder_forward.8} parent=0 // pred_fallthru
    _
  // Predicated region
  $region14: #{encoder_forward.8} parent=0 // pred_check
    _
  $region15: #{encoder_forward.8} parent=0 // pred_check_branch
    %16 = sbr.rel (0) target = $region17
  $region16: #{encoder_forward.8} parent=0 // pred_region
    _
  $region17: #{encoder_forward.8} parent=0 // pred_fallthru
    _
  %v18 = vld [vmem:[%s0] sm:$0xff]
  %v19 = vld [vmem:[%s0 + $0x8] sm:$0xf]
  %v20 = vld [vmem:[%s0 + $0xc] sm:$0xff]
  %v21 = vld [vmem:[%s0 + $0x14] sm:$0xf]
  %v22 = vld [vmem:[%s0 + $0x18] sm:$0xff]
  %v23 = vld [vmem:[%s0 + $0x20] sm:$0xf]
  %v24 = vld [vmem:[%s0 + $0x24] sm:$0xff]
  %v25 = vld [vmem:[%s0 + $0x2c] sm:$0xf]
  %v26 = vmax.bf16 %v18, 0
  %v27 = vmax.bf16 %v19, 0
  %v28 = vmax.bf16 %v20, 0
  %v29 = vmax.bf16 %v21, 0
  %v30 = vmax.bf16 %v22, 0
  %v31 = vmax.bf16 %v23, 0
  %v32 = vmax.bf16 %v24, 0
  %v33 = vmax.bf16 %v25, 0
  %v34 = vld [vmem:[%s1] sm:$0xf]
  %v35 = vld [vmem:[%s1 + $0x4] sm:$0xf]
  %v36 = vld [vmem:[%s1 + $0x8] sm:$0xf]
  %v37 = vld [vmem:[%s1 + $0xc] sm:$0xf]
  %v38 = vld [vmem:[%s1 + $0x10] sm:$0xf]
  %v39 = vld [vmem:[%s1 + $0x14] sm:$0xf]
  %v40 = vld [vmem:[%s1 + $0x18] sm:$0xf]
  %v41 = vld [vmem:[%s1 + $0x1c] sm:$0xf]
  %v42 = vld [vmem:[%s1 + $0x20] sm:$0xf]
  %v43 = vld [vmem:[%s1 + $0x24] sm:$0xf]
  %v44 = vld [vmem:[%s1 + $0x28] sm:$0xf]
  %v45 = vld [vmem:[%s1 + $0x2c] sm:$0xf]
  %v46 = vld [vmem:[%s1 + $0x30] sm:$0xf]
  %v47 = vld [vmem:[%s1 + $0x34] sm:$0xf]
  %v48 = vld [vmem:[%s1 + $0x38] sm:$0xf]
  %v49 = vld [vmem:[%s1 + $0x3c] sm:$0xf]
  %v50 = vld [vmem:[%s1 + $0x40] sm:$0xf]
  %v51 = vld [vmem:[%s1 + $0x44] sm:$0xf]
  %v52 = vld [vmem:[%s1 + $0x48] sm:$0xf]
  %v53 = vld [vmem:[%s1 + $0x4c] sm:$0xf]
  %v54 = vld [vmem:[%s1 + $0x50] sm:$0xf]
  %v55 = vld [vmem:[%s1 + $0x54] sm:$0xf]
  %v56 = vld [vmem:[%s1 + $0x58] sm:$0xf]
  %v57 = vld [vmem:[%s1 + $0x5c] sm:$0xf]
  %v58 = vld [vmem:[%s1 + $0x60] sm:$0xf]
  %v59 = vld [vmem:[%s1 + $0x64] sm:$0xf]
  %v60 = vld [vmem:[%s1 + $0x68] sm:$0xf]
  %v61 = vld [vmem:[%s1 + $0x6c] sm:$0xf]
  %v62 = vld [vmem:[%s1 + $0x70] sm:$0xf]
  %v63 = vld [vmem:[%s1 + $0x74] sm:$0xf]
  %v64 = vld [vmem:[%s1 + $0x78] sm:$0xf]
  %v65 = vld [vmem:[%s1 + $0x7c] sm:$0xf]
  %v66 = vld [vmem:[%s1 + $0x80] sm:$0xf]
  %v67 = vld [vmem:[%s1 + $0x84] sm:$0xf]
  %v68 = vld [vmem:[%s1 + $0x88] sm:$0xf]
  %v69 = vld [vmem:[%s1 + $0x8c] sm:$0xf]
  %v78 = vunpack.c.l.b16 %v26
  %v79 = vunpack.c.h.b16 %v26
  %v80 = vunpack.c.l.b16 %v27
  %v81 = vunpack.c.l.b16 %v28
  %v82 = vunpack.c.h.b16 %v28
  %v83 = vunpack.c.l.b16 %v29
  %v84 = vunpack.c.l.b16 %v30
  %v85 = vunpack.c.h.b16 %v30
  %v86 = vunpack.c.l.b16 %v31
  %v87 = vunpack.c.l.b16 %v32
  %v88 = vunpack.c.h.b16 %v32
  %v89 = vunpack.c.l.b16 %v33
  %v90 = vpack.c.b16 %v81, %v78
  %v91 = vpack.c.b16 %v82, %v79
  %v92 = vpack.c.b16 %v83, %v80
  %v93 = vpack.c.b16 %v87, %v84
  %v94 = vpack.c.b16 %v88, %v85
  %v95 = vpack.c.b16 %v89, %v86
  %v136 = vunpack.c.l.b16 %v34
  %v137 = vunpack.c.l.b16 %v35
  %v138 = vunpack.c.l.b16 %v36
  %v139 = vunpack.c.l.b16 %v37
  %v140 = vunpack.c.l.b16 %v38
  %v141 = vunpack.c.l.b16 %v39
  %v142 = vunpack.c.l.b16 %v40
  %v143 = vunpack.c.l.b16 %v41
  %v144 = vunpack.c.l.b16 %v42
  %v145 = vunpack.c.l.b16 %v43
  %v146 = vunpack.c.l.b16 %v44
  %v147 = vunpack.c.l.b16 %v45
  %v148 = vunpack.c.l.b16 %v46
  %v149 = vunpack.c.l.b16 %v47
  %v150 = vunpack.c.l.b16 %v48
  %v151 = vunpack.c.l.b16 %v49
  %v152 = vunpack.c.l.b16 %v50
  %v153 = vunpack.c.l.b16 %v51
  %v154 = vunpack.c.l.b16 %v52
  %v155 = vunpack.c.l.b16 %v53
  %v156 = vunpack.c.l.b16 %v54
  %v157 = vunpack.c.l.b16 %v55
  %v158 = vunpack.c.l.b16 %v56
  %v159 = vunpack.c.l.b16 %v57
  %v160 = vunpack.c.l.b16 %v58
  %v161 = vunpack.c.l.b16 %v59
  %v162 = vunpack.c.l.b16 %v60
  %v163 = vunpack.c.l.b16 %v61
  %v164 = vunpack.c.l.b16 %v62
  %v165 = vunpack.c.l.b16 %v63
  %v166 = vunpack.c.l.b16 %v64
  %v167 = vunpack.c.l.b16 %v65
  %v168 = vunpack.c.l.b16 %v66
  %v169 = vunpack.c.l.b16 %v67
  %v170 = vunpack.c.l.b16 %v68
  %v171 = vunpack.c.l.b16 %v69
  %v172 = vpack.c.b16 %v137, %v136
  %v173 = vpack.c.b16 %v139, %v138
  %v174 = vpack.c.b16 %v141, %v140
  %v175 = vpack.c.b16 %v143, %v142
  %v176 = vpack.c.b16 %v145, %v144
  %v177 = vpack.c.b16 %v147, %v146
  %v178 = vpack.c.b16 %v149, %v148
  %v179 = vpack.c.b16 %v151, %v150
  %v180 = vpack.c.b16 %v153, %v152
  %v181 = vpack.c.b16 %v155, %v154
  %v182 = vpack.c.b16 %v157, %v156
  %v183 = vpack.c.b16 %v159, %v158
  %v184 = vpack.c.b16 %v161, %v160
  %v185 = vpack.c.b16 %v163, %v162
  %v186 = vpack.c.b16 %v165, %v164
  %v187 = vpack.c.b16 %v167, %v166
  %v188 = vpack.c.b16 %v169, %v168
  %v189 = vpack.c.b16 %v171, %v170
  %vm208 = vcmask 261120
  %v210 = vsel %vm208, %v92, 0
  %v213 = vsel %vm208, %v95, 0
  %215 = vmatprep.subr.bf16.mxu0 0
  %216 = vmatpush1.bf16.msra.mxu0 %v179
  %217 = vmatprep.subr.bf16.mxu0 0
  %218 = vmatpush1.bf16.msra.mxu0 %v178
  %219 = vmatprep.subr.bf16.mxu0 0
  %220 = vmatpush1.bf16.msra.mxu0 %v177
  %221 = vmatprep.subr.bf16.mxu0 0
  %222 = vmatpush1.bf16.msra.mxu0 %v176
  %223 = vmatprep.subr.bf16.mxu0 0
  %224 = vmatpush1.bf16.msra.mxu0 %v175
  %225 = vmatprep.subr.bf16.mxu0 0
  %226 = vmatpush1.bf16.msra.mxu0 %v174
  %227 = vmatprep.subr.bf16.mxu0 0
  %228 = vmatpush1.bf16.msra.mxu0 %v173
  %229 = vmatprep.subr.bf16.mxu0 0
  %230 = vmatpush1.bf16.msra.mxu0 %v172
  %231 = vmatprep.subr.bf16.mxu0 0
  %232 = vmatpush2.bf16.msra.mxu0 %v187
  %233 = vmatprep.subr.bf16.mxu0 0
  %234 = vmatpush2.bf16.msra.mxu0 %v186
  %235 = vmatprep.subr.bf16.mxu0 0
  %236 = vmatpush2.bf16.msra.mxu0 %v185
  %237 = vmatprep.subr.bf16.mxu0 0
  %238 = vmatpush2.bf16.msra.mxu0 %v184
  %239 = vmatprep.subr.bf16.mxu0 0
  %240 = vmatpush2.bf16.msra.mxu0 %v183
  %241 = vmatprep.subr.bf16.mxu0 0
  %242 = vmatpush2.bf16.msra.mxu0 %v182
  %243 = vmatprep.subr.bf16.mxu0 0
  %244 = vmatpush2.bf16.msra.mxu0 %v181
  %245 = vmatprep.subr.bf16.mxu0 0
  %246 = vmatpush2.bf16.msra.mxu0 %v180
  %247 = vmatprep.mubr.bf16.mxu0 %v91
  %248 = vmatmul.mubr.bf16.gmra.mxu0 %v90
  %v249 = vpop.f32.mrf.mxu0
  %v250 = vadd.f32 0.0, %v249
  %v251 = vpop.f32.mrf.mxu0
  %v252 = vpop.f32.mrf.mxu0
  %v253 = vadd.f32 0.0, %v252
  %v254 = vpop.f32.mrf.mxu0
  %255 = vmatprep.mubr.bf16.mxu0 %v94
  %256 = vmatmul.mubr.bf16.gmra.mxu0 %v93
  %v257 = vpop.f32.mrf.mxu0
  %v258 = vadd.f32 0.0, %v257
  %v259 = vpop.f32.mrf.mxu0
  %v260 = vpop.f32.mrf.mxu0
  %v261 = vadd.f32 0.0, %v260
  %v262 = vpop.f32.mrf.mxu0
  %263 = vdwg.mxu0
  %264 = vmatprep.subr.bf16.mxu0 0
  %265 = vmatpush1.bf16.msra.mxu0 0
  %266 = vmatprep.subr.bf16.mxu0 0
  %267 = vmatpush1.bf16.msra.mxu0 0
  %268 = vmatprep.subr.bf16.mxu0 0
  %269 = vmatpush1.bf16.msra.mxu0 0
  %270 = vmatprep.subr.bf16.mxu0 0
  %271 = vmatpush1.bf16.msra.mxu0 0
  %272 = vmatprep.subr.bf16.mxu0 0
  %273 = vmatpush1.bf16.msra.mxu0 0
  %274 = vmatprep.subr.bf16.mxu0 0
  %275 = vmatpush1.bf16.msra.mxu0 0
  %276 = vmatprep.subr.bf16.mxu0 0
  %277 = vmatpush1.bf16.msra.mxu0 %v189
  %278 = vmatprep.subr.bf16.mxu0 0
  %279 = vmatpush1.bf16.msra.mxu0 %v188
  %280 = vmatprep.subr.bf16.mxu0 0
  %281 = vmatpush2.bf16.msra.mxu0 0
  %282 = vmatprep.subr.bf16.mxu0 0
  %283 = vmatpush2.bf16.msra.mxu0 0
  %284 = vmatprep.subr.bf16.mxu0 0
  %285 = vmatpush2.bf16.msra.mxu0 0
  %286 = vmatprep.subr.bf16.mxu0 0
  %287 = vmatpush2.bf16.msra.mxu0 0
  %288 = vmatprep.subr.bf16.mxu0 0
  %289 = vmatpush2.bf16.msra.mxu0 0
  %290 = vmatprep.subr.bf16.mxu0 0
  %291 = vmatpush2.bf16.msra.mxu0 0
  %292 = vmatprep.subr.bf16.mxu0 0
  %293 = vmatpush2.bf16.msra.mxu0 0
  %294 = vmatprep.subr.bf16.mxu0 0
  %295 = vmatpush2.bf16.msra.mxu0 0
  %296 = vmatprep.mubr.bf16.mxu0 0
  %297 = vmatmul.mubr.bf16.gmra.mxu0 %v210
  %v298 = vpop.f32.mrf.mxu0
  %v299 = vadd.f32 %v250, %v298
  %v300 = vpop.f32.mrf.mxu0
  %v301 = vpop.f32.mrf.mxu0
  %v302 = vadd.f32 %v253, %v301
  %v303 = vpop.f32.mrf.mxu0
  %304 = vmatprep.mubr.bf16.mxu0 0
  %305 = vmatmul.mubr.bf16.gmra.mxu0 %v213
  %v306 = vpop.f32.mrf.mxu0
  %v307 = vadd.f32 %v258, %v306
  %v308 = vpop.f32.mrf.mxu0
  %v309 = vpop.f32.mrf.mxu0
  %v310 = vadd.f32 %v261, %v309
  %v311 = vpop.f32.mrf.mxu0
  %312 = vdwg.mxu0
  %v313 = vmax.f32 %v299, 0.0
  %v314 = vmax.f32 %v302, 0.0
  %v315 = vmax.f32 %v307, 0.0
  %v316 = vmax.f32 %v310, 0.0
  %v317 = vpack.c.bf16 %v314, %v313
  %v318 = vpack.c.bf16 %v316, %v315
  %v319 = vld [vmem:[%s2] sm:$0xf]
  %v320 = vld [vmem:[%s2 + $0x4] sm:$0xf]
  %v321 = vld [vmem:[%s2 + $0x8] sm:$0xf]
  %v322 = vld [vmem:[%s2 + $0xc] sm:$0xf]
  %v323 = vld [vmem:[%s2 + $0x10] sm:$0xf]
  %v324 = vld [vmem:[%s2 + $0x14] sm:$0xf]
  %v325 = vld [vmem:[%s2 + $0x18] sm:$0xf]
  %v326 = vld [vmem:[%s2 + $0x1c] sm:$0xf]
  %v327 = vld [vmem:[%s2 + $0x20] sm:$0xf]
  %v328 = vld [vmem:[%s2 + $0x24] sm:$0xf]
  %v329 = vld [vmem:[%s2 + $0x28] sm:$0xf]
  %v330 = vld [vmem:[%s2 + $0x2c] sm:$0xf]
  %v331 = vld [vmem:[%s2 + $0x30] sm:$0xf]
  %v332 = vld [vmem:[%s2 + $0x34] sm:$0xf]
  %v333 = vld [vmem:[%s2 + $0x38] sm:$0xf]
  %v334 = vld [vmem:[%s2 + $0x3c] sm:$0xf]
  %v335 = vld [vmem:[%s3] sm:$0xff]
  %v336 = vld [vmem:[%s3 + $0x8] sm:$0xff]
  %v337 = vld [vmem:[%s3 + $0x10] sm:$0xff]
  %v338 = vld [vmem:[%s3 + $0x18] sm:$0xff]
  %v355 = vunpack.c.l.b16 %v319
  %v356 = vunpack.c.l.b16 %v320
  %v357 = vunpack.c.l.b16 %v321
  %v358 = vunpack.c.l.b16 %v322
  %v359 = vunpack.c.l.b16 %v323
  %v360 = vunpack.c.l.b16 %v324
  %v361 = vunpack.c.l.b16 %v325
  %v362 = vunpack.c.l.b16 %v326
  %v363 = vunpack.c.l.b16 %v327
  %v364 = vunpack.c.l.b16 %v328
  %v365 = vunpack.c.l.b16 %v329
  %v366 = vunpack.c.l.b16 %v330
  %v367 = vunpack.c.l.b16 %v331
  %v368 = vunpack.c.l.b16 %v332
  %v369 = vunpack.c.l.b16 %v333
  %v370 = vunpack.c.l.b16 %v334
  %v371 = vpack.c.b16 %v356, %v355
  %v372 = vpack.c.b16 %v358, %v357
  %v373 = vpack.c.b16 %v360, %v359
  %v374 = vpack.c.b16 %v362, %v361
  %v375 = vpack.c.b16 %v364, %v363
  %v376 = vpack.c.b16 %v366, %v365
  %v377 = vpack.c.b16 %v368, %v367
  %v378 = vpack.c.b16 %v370, %v369
  %387 = vmatprep.subr.bf16.mxu0 0
  %388 = vmatpush1.bf16.msra.mxu0 %v378
  %389 = vmatprep.subr.bf16.mxu0 0
  %390 = vmatpush1.bf16.msra.mxu0 %v377
  %391 = vmatprep.subr.bf16.mxu0 0
  %392 = vmatpush1.bf16.msra.mxu0 %v376
  %393 = vmatprep.subr.bf16.mxu0 0
  %394 = vmatpush1.bf16.msra.mxu0 %v375
  %395 = vmatprep.subr.bf16.mxu0 0
  %396 = vmatpush1.bf16.msra.mxu0 %v374
  %397 = vmatprep.subr.bf16.mxu0 0
  %398 = vmatpush1.bf16.msra.mxu0 %v373
  %399 = vmatprep.subr.bf16.mxu0 0
  %400 = vmatpush1.bf16.msra.mxu0 %v372
  %401 = vmatprep.subr.bf16.mxu0 0
  %402 = vmatpush1.bf16.msra.mxu0 %v371
  %403 = vmatprep.subr.bf16.mxu0 0
  %404 = vmatpush2.bf16.msra.mxu0 0
  %405 = vmatprep.subr.bf16.mxu0 0
  %406 = vmatpush2.bf16.msra.mxu0 0
  %407 = vmatprep.subr.bf16.mxu0 0
  %408 = vmatpush2.bf16.msra.mxu0 0
  %409 = vmatprep.subr.bf16.mxu0 0
  %410 = vmatpush2.bf16.msra.mxu0 0
  %411 = vmatprep.subr.bf16.mxu0 0
  %412 = vmatpush2.bf16.msra.mxu0 0
  %413 = vmatprep.subr.bf16.mxu0 0
  %414 = vmatpush2.bf16.msra.mxu0 0
  %415 = vmatprep.subr.bf16.mxu0 0
  %416 = vmatpush2.bf16.msra.mxu0 0
  %417 = vmatprep.subr.bf16.mxu0 0
  %418 = vmatpush2.bf16.msra.mxu0 0
  %419 = vmatprep.mubr.bf16.mxu0 0
  %420 = vmatmul.mubr.bf16.gmra.mxu0 %v317
  %v421 = vpop.f32.mrf.mxu0
  %v422 = vadd.f32 %v335, %v421
  %v423 = vpop.f32.mrf.mxu0
  %v424 = vpop.f32.mrf.mxu0
  %v425 = vadd.f32 %v336, %v424
  %v426 = vpop.f32.mrf.mxu0
  %427 = vmatprep.mubr.bf16.mxu0 0
  %428 = vmatmul.mubr.bf16.gmra.mxu0 %v318
  %v429 = vpop.f32.mrf.mxu0
  %v430 = vadd.f32 %v337, %v429
  %v431 = vpop.f32.mrf.mxu0
  %v432 = vpop.f32.mrf.mxu0
  %v433 = vadd.f32 %v338, %v432
  %v434 = vpop.f32.mrf.mxu0
  %435 = vdwg.mxu0
  %436 = vst [vmem:[%s4] sm:$0xff] %v422
  %437 = vst [vmem:[%s4 + $0x8] sm:$0xff] %v425
  %438 = vst [vmem:[%s4 + $0x10] sm:$0xff] %v430
  %439 = vst [vmem:[%s4 + $0x18] sm:$0xff] %v433
  // Predicated region
  $region18: #{encoder_forward.8} parent=0 // pred_check
    _
  $region19: #{encoder_forward.8} parent=0 // pred_check_branch
    %441 = sbr.rel (0) target = $region21
  $region20: #{encoder_forward.8} parent=0 // pred_region
    _
  $region21: #{encoder_forward.8} parent=0 // pred_fallthru
    _
  // Predicated region
  $region22: #{encoder_forward.8} parent=0 // pred_check
    _
  $region23: #{encoder_forward.8} parent=0 // pred_check_branch
    %443 = sbr.rel (0) target = $region25
  $region24: #{encoder_forward.8} parent=0 // pred_region
    _
  $region25: #{encoder_forward.8} parent=0 // pred_fallthru
    _

// kernel: encoder_forward.9
$region0: #{encoder_forward.9}
  #allocation0 [shape = 'u32[]', space=smem, size = 0x4, offset = 0x4, fixed_abs, tag = 'smem constant byte address 0x4 - core index']
  #allocation1 [shape = 'u32[144,128]{1,0:T(1,128)}', space=vmem, size = 0x12000, scoped, tag = 'internal scratch']
  %s0 = inlined_call_operand.vmem [shape: bf16[32,288], index: 0, kind: input, shape index: {}]
  %s1 = inlined_call_operand.vmem [shape: bf16[288,128], index: 1, kind: input, shape index: {}]
  %s2 = inlined_call_operand.vmem [shape: bf16[128,128], index: 2, kind: input, shape index: {}]
  %s3 = inlined_call_operand.vmem [shape: f32[32,128], index: 3, kind: input, shape index: {}]
  %s4 = inlined_call_operand.hbm [shape: f32[32,128], index: 4, kind: output, shape index: {}]
  %s5 = sld [smem:[#allocation0]]
  $region26: #{encoder_forward.9} parent=0
    _
  %s7 = ssub.s32 1, %s5
  %s8 = scalar_select 0, %s7, %s5
  $region1: #{encoder_forward.9} parent=0
    #allocation2 [shape = 'u8[16384]{0}', space=vmem, size = 0x4000, scoped, tag = 'output window, operand 0, single buffered']
    #allocation3 [shape = 's32[1]{0}', space=sflag, size = 0x4, scoped, tag = 'scoped memory for encoder_forward.9']
    %9 = vsyncpa [#allocation3], 0
    // Predicated region
    $region2: #{encoder_forward.9} parent=1 // pred_check
      _
    $region3: #{encoder_forward.9} parent=1 // pred_check_branch
      %11 = sbr.rel (0) target = $region5
    $region4: #{encoder_forward.9} parent=1 // pred_region
      _
    $region5: #{encoder_forward.9} parent=1 // pred_fallthru
      _
    // Predicated region
    $region6: #{encoder_forward.9} parent=1 // pred_check
      _
    $region7: #{encoder_forward.9} parent=1 // pred_check_branch
      %13 = sbr.rel (0) target = $region9
    $region8: #{encoder_forward.9} parent=1 // pred_region
      _
    $region9: #{encoder_forward.9} parent=1 // pred_fallthru
      _
    // Predicated region
    $region10: #{encoder_forward.9} parent=1 // pred_check
      _
    $region11: #{encoder_forward.9} parent=1 // pred_check_branch
      %15 = sbr.rel (0) target = $region13
    $region12: #{encoder_forward.9} parent=1 // pred_region
      _
    $region13: #{encoder_forward.9} parent=1 // pred_fallthru
      _
    // Predicated region
    $region14: #{encoder_forward.9} parent=1 // pred_check
      _
    $region15: #{encoder_forward.9} parent=1 // pred_check_branch
      %17 = sbr.rel (0) target = $region17
    $region16: #{encoder_forward.9} parent=1 // pred_region
      _
    $region17: #{encoder_forward.9} parent=1 // pred_fallthru
      _
    %v19 = vld [vmem:[%s0] sm:$0xff]
    %v20 = vld [vmem:[%s0 + $0x8] sm:$0xf]
    %v21 = vld [vmem:[%s0 + $0xc] sm:$0xff]
    %v22 = vld [vmem:[%s0 + $0x14] sm:$0xf]
    %v23 = vld [vmem:[%s0 + $0x18] sm:$0xff]
    %v24 = vld [vmem:[%s0 + $0x20] sm:$0xf]
    %v25 = vld [vmem:[%s0 + $0x24] sm:$0xff]
    %v26 = vld [vmem:[%s0 + $0x2c] sm:$0xf]
    %v27 = vmax.bf16 %v19, 0
    %v28 = vmax.bf16 %v20, 0
    %v29 = vmax.bf16 %v21, 0
    %v30 = vmax.bf16 %v22, 0
    %v31 = vmax.bf16 %v23, 0
    %v32 = vmax.bf16 %v24, 0
    %v33 = vmax.bf16 %v25, 0
    %v34 = vmax.bf16 %v26, 0
    %v35 = vld [vmem:[%s1] sm:$0xf]
    %v36 = vld [vmem:[%s1 + $0x4] sm:$0xf]
    %v37 = vld [vmem:[%s1 + $0x8] sm:$0xf]
    %v38 = vld [vmem:[%s1 + $0xc] sm:$0xf]
    %v39 = vld [vmem:[%s1 + $0x10] sm:$0xf]
    %v40 = vld [vmem:[%s1 + $0x14] sm:$0xf]
    %v41 = vld [vmem:[%s1 + $0x18] sm:$0xf]
    %v42 = vld [vmem:[%s1 + $0x1c] sm:$0xf]
    %v43 = vld [vmem:[%s1 + $0x20] sm:$0xf]
    %v44 = vld [vmem:[%s1 + $0x24] sm:$0xf]
    %v45 = vld [vmem:[%s1 + $0x28] sm:$0xf]
    %v46 = vld [vmem:[%s1 + $0x2c] sm:$0xf]
    %v47 = vld [vmem:[%s1 + $0x30] sm:$0xf]
    %v48 = vld [vmem:[%s1 + $0x34] sm:$0xf]
    %v49 = vld [vmem:[%s1 + $0x38] sm:$0xf]
    %v50 = vld [vmem:[%s1 + $0x3c] sm:$0xf]
    %v51 = vld [vmem:[%s1 + $0x40] sm:$0xf]
    %v52 = vld [vmem:[%s1 + $0x44] sm:$0xf]
    %v53 = vld [vmem:[%s1 + $0x48] sm:$0xf]
    %v54 = vld [vmem:[%s1 + $0x4c] sm:$0xf]
    %v55 = vld [vmem:[%s1 + $0x50] sm:$0xf]
    %v56 = vld [vmem:[%s1 + $0x54] sm:$0xf]
    %v57 = vld [vmem:[%s1 + $0x58] sm:$0xf]
    %v58 = vld [vmem:[%s1 + $0x5c] sm:$0xf]
    %v59 = vld [vmem:[%s1 + $0x60] sm:$0xf]
    %v60 = vld [vmem:[%s1 + $0x64] sm:$0xf]
    %v61 = vld [vmem:[%s1 + $0x68] sm:$0xf]
    %v62 = vld [vmem:[%s1 + $0x6c] sm:$0xf]
    %v63 = vld [vmem:[%s1 + $0x70] sm:$0xf]
    %v64 = vld [vmem:[%s1 + $0x74] sm:$0xf]
    %v65 = vld [vmem:[%s1 + $0x78] sm:$0xf]
    %v66 = vld [vmem:[%s1 + $0x7c] sm:$0xf]
    %v67 = vld [vmem:[%s1 + $0x80] sm:$0xf]
    %v68 = vld [vmem:[%s1 + $0x84] sm:$0xf]
    %v69 = vld [vmem:[%s1 + $0x88] sm:$0xf]
    %v70 = vld [vmem:[%s1 + $0x8c] sm:$0xf]
    %v79 = vunpack.c.l.b16 %v27
    %v80 = vunpack.c.h.b16 %v27
    %v81 = vunpack.c.l.b16 %v28
    %v82 = vunpack.c.l.b16 %v29
    %v83 = vunpack.c.h.b16 %v29
    %v84 = vunpack.c.l.b16 %v30
    %v85 = vunpack.c.l.b16 %v31
    %v86 = vunpack.c.h.b16 %v31
    %v87 = vunpack.c.l.b16 %v32
    %v88 = vunpack.c.l.b16 %v33
    %v89 = vunpack.c.h.b16 %v33
    %v90 = vunpack.c.l.b16 %v34
    %v91 = vpack.c.b16 %v82, %v79
    %v92 = vpack.c.b16 %v83, %v80
    %v93 = vpack.c.b16 %v84, %v81
    %v94 = vpack.c.b16 %v88, %v85
    %v95 = vpack.c.b16 %v89, %v86
    %v96 = vpack.c.b16 %v90, %v87
    %v137 = vunpack.c.l.b16 %v35
    %v138 = vunpack.c.l.b16 %v36
    %v139 = vunpack.c.l.b16 %v37
    %v140 = vunpack.c.l.b16 %v38
    %v141 = vunpack.c.l.b16 %v39
    %v142 = vunpack.c.l.b16 %v40
    %v143 = vunpack.c.l.b16 %v41
    %v144 = vunpack.c.l.b16 %v42
    %v145 = vunpack.c.l.b16 %v43
    %v146 = vunpack.c.l.b16 %v44
    %v147 = vunpack.c.l.b16 %v45
    %v148 = vunpack.c.l.b16 %v46
    %v149 = vunpack.c.l.b16 %v47
    %v150 = vunpack.c.l.b16 %v48
    %v151 = vunpack.c.l.b16 %v49
    %v152 = vunpack.c.l.b16 %v50
    %v153 = vunpack.c.l.b16 %v51
    %v154 = vunpack.c.l.b16 %v52
    %v155 = vunpack.c.l.b16 %v53
    %v156 = vunpack.c.l.b16 %v54
    %v157 = vunpack.c.l.b16 %v55
    %v158 = vunpack.c.l.b16 %v56
    %v159 = vunpack.c.l.b16 %v57
    %v160 = vunpack.c.l.b16 %v58
    %v161 = vunpack.c.l.b16 %v59
    %v162 = vunpack.c.l.b16 %v60
    %v163 = vunpack.c.l.b16 %v61
    %v164 = vunpack.c.l.b16 %v62
    %v165 = vunpack.c.l.b16 %v63
    %v166 = vunpack.c.l.b16 %v64
    %v167 = vunpack.c.l.b16 %v65
    %v168 = vunpack.c.l.b16 %v66
    %v169 = vunpack.c.l.b16 %v67
    %v170 = vunpack.c.l.b16 %v68
    %v171 = vunpack.c.l.b16 %v69
    %v172 = vunpack.c.l.b16 %v70
    %v173 = vpack.c.b16 %v138, %v137
    %v174 = vpack.c.b16 %v140, %v139
    %v175 = vpack.c.b16 %v142, %v141
    %v176 = vpack.c.b16 %v144, %v143
    %v177 = vpack.c.b16 %v146, %v145
    %v178 = vpack.c.b16 %v148, %v147
    %v179 = vpack.c.b16 %v150, %v149
    %v180 = vpack.c.b16 %v152, %v151
    %v181 = vpack.c.b16 %v154, %v153
    %v182 = vpack.c.b16 %v156, %v155
    %v183 = vpack.c.b16 %v158, %v157
    %v184 = vpack.c.b16 %v160, %v159
    %v185 = vpack.c.b16 %v162, %v161
    %v186 = vpack.c.b16 %v164, %v163
    %v187 = vpack.c.b16 %v166, %v165
    %v188 = vpack.c.b16 %v168, %v167
    %v189 = vpack.c.b16 %v170, %v169
    %v190 = vpack.c.b16 %v172, %v171
    %vm209 = vcmask 261120
    %v211 = vsel %vm209, %v93, 0
    %v214 = vsel %vm209, %v96, 0
    %216 = vmatprep.subr.bf16.mxu0 0
    %217 = vmatpush1.bf16.msra.mxu0 %v180
    %218 = vmatprep.subr.bf16.mxu0 0
    %219 = vmatpush1.bf16.msra.mxu0 %v179
    %220 = vmatprep.subr.bf16.mxu0 0
    %221 = vmatpush1.bf16.msra.mxu0 %v178
    %222 = vmatprep.subr.bf16.mxu0 0
    %223 = vmatpush1.bf16.msra.mxu0 %v177
    %224 = vmatprep.subr.bf16.mxu0 0
    %225 = vmatpush1.bf16.msra.mxu0 %v176
    %226 = vmatprep.subr.bf16.mxu0 0
    %227 = vmatpush1.bf16.msra.mxu0 %v175
    %228 = vmatprep.subr.bf16.mxu0 0
    %229 = vmatpush1.bf16.msra.mxu0 %v174
    %230 = vmatprep.subr.bf16.mxu0 0
    %231 = vmatpush1.bf16.msra.mxu0 %v173
    %232 = vmatprep.subr.bf16.mxu0 0
    %233 = vmatpush2.bf16.msra.mxu0 %v188
    %234 = vmatprep.subr.bf16.mxu0 0
    %235 = vmatpush2.bf16.msra.mxu0 %v187
    %236 = vmatprep.subr.bf16.mxu0 0
    %237 = vmatpush2.bf16.msra.mxu0 %v186
    %238 = vmatprep.subr.bf16.mxu0 0
    %239 = vmatpush2.bf16.msra.mxu0 %v185
    %240 = vmatprep.subr.bf16.mxu0 0
    %241 = vmatpush2.bf16.msra.mxu0 %v184
    %242 = vmatprep.subr.bf16.mxu0 0
    %243 = vmatpush2.bf16.msra.mxu0 %v183
    %244 = vmatprep.subr.bf16.mxu0 0
    %245 = vmatpush2.bf16.msra.mxu0 %v182
    %246 = vmatprep.subr.bf16.mxu0 0
    %247 = vmatpush2.bf16.msra.mxu0 %v181
    %248 = vmatprep.mubr.bf16.mxu0 %v92
    %249 = vmatmul.mubr.bf16.gmra.mxu0 %v91
    %v250 = vpop.f32.mrf.mxu0
    %v251 = vadd.f32 0.0, %v250
    %v252 = vpop.f32.mrf.mxu0
    %v253 = vpop.f32.mrf.mxu0
    %v254 = vadd.f32 0.0, %v253
    %v255 = vpop.f32.mrf.mxu0
    %256 = vmatprep.mubr.bf16.mxu0 %v95
    %257 = vmatmul.mubr.bf16.gmra.mxu0 %v94
    %v258 = vpop.f32.mrf.mxu0
    %v259 = vadd.f32 0.0, %v258
    %v260 = vpop.f32.mrf.mxu0
    %v261 = vpop.f32.mrf.mxu0
    %v262 = vadd.f32 0.0, %v261
    %v263 = vpop.f32.mrf.mxu0
    %264 = vdwg.mxu0
    %265 = vmatprep.subr.bf16.mxu0 0
    %266 = vmatpush1.bf16.msra.mxu0 0
    %267 = vmatprep.subr.bf16.mxu0 0
    %268 = vmatpush1.bf16.msra.mxu0 0
    %269 = vmatprep.subr.bf16.mxu0 0
    %270 = vmatpush1.bf16.msra.mxu0 0
    %271 = vmatprep.subr.bf16.mxu0 0
    %272 = vmatpush1.bf16.msra.mxu0 0
    %273 = vmatprep.subr.bf16.mxu0 0
    %274 = vmatpush1.bf16.msra.mxu0 0
    %275 = vmatprep.subr.bf16.mxu0 0
    %276 = vmatpush1.bf16.msra.mxu0 0
    %277 = vmatprep.subr.bf16.mxu0 0
    %278 = vmatpush1.bf16.msra.mxu0 %v190
    %279 = vmatprep.subr.bf16.mxu0 0
    %280 = vmatpush1.bf16.msra.mxu0 %v189
    %281 = vmatprep.subr.bf16.mxu0 0
    %282 = vmatpush2.bf16.msra.mxu0 0
    %283 = vmatprep.subr.bf16.mxu0 0
    %284 = vmatpush2.bf16.msra.mxu0 0
    %285 = vmatprep.subr.bf16.mxu0 0
    %286 = vmatpush2.bf16.msra.mxu0 0
    %287 = vmatprep.subr.bf16.mxu0 0
    %288 = vmatpush2.bf16.msra.mxu0 0
    %289 = vmatprep.subr.bf16.mxu0 0
    %290 = vmatpush2.bf16.msra.mxu0 0
    %291 = vmatprep.subr.bf16.mxu0 0
    %292 = vmatpush2.bf16.msra.mxu0 0
    %293 = vmatprep.subr.bf16.mxu0 0
    %294 = vmatpush2.bf16.msra.mxu0 0
    %295 = vmatprep.subr.bf16.mxu0 0
    %296 = vmatpush2.bf16.msra.mxu0 0
    %297 = vmatprep.mubr.bf16.mxu0 0
    %298 = vmatmul.mubr.bf16.gmra.mxu0 %v211
    %v299 = vpop.f32.mrf.mxu0
    %v300 = vadd.f32 %v251, %v299
    %v301 = vpop.f32.mrf.mxu0
    %v302 = vpop.f32.mrf.mxu0
    %v303 = vadd.f32 %v254, %v302
    %v304 = vpop.f32.mrf.mxu0
    %305 = vmatprep.mubr.bf16.mxu0 0
    %306 = vmatmul.mubr.bf16.gmra.mxu0 %v214
    %v307 = vpop.f32.mrf.mxu0
    %v308 = vadd.f32 %v259, %v307
    %v309 = vpop.f32.mrf.mxu0
    %v310 = vpop.f32.mrf.mxu0
    %v311 = vadd.f32 %v262, %v310
    %v312 = vpop.f32.mrf.mxu0
    %313 = vdwg.mxu0
    %v314 = vmax.f32 %v300, 0.0
    %v315 = vmax.f32 %v303, 0.0
    %v316 = vmax.f32 %v308, 0.0
    %v317 = vmax.f32 %v311, 0.0
    %v318 = vpack.c.bf16 %v315, %v314
    %v319 = vpack.c.bf16 %v317, %v316
    %v320 = vld [vmem:[%s2] sm:$0xf]
    %v321 = vld [vmem:[%s2 + $0x4] sm:$0xf]
    %v322 = vld [vmem:[%s2 + $0x8] sm:$0xf]
    %v323 = vld [vmem:[%s2 + $0xc] sm:$0xf]
    %v324 = vld [vmem:[%s2 + $0x10] sm:$0xf]
    %v325 = vld [vmem:[%s2 + $0x14] sm:$0xf]
    %v326 = vld [vmem:[%s2 + $0x18] sm:$0xf]
    %v327 = vld [vmem:[%s2 + $0x1c] sm:$0xf]
    %v328 = vld [vmem:[%s2 + $0x20] sm:$0xf]
    %v329 = vld [vmem:[%s2 + $0x24] sm:$0xf]
    %v330 = vld [vmem:[%s2 + $0x28] sm:$0xf]
    %v331 = vld [vmem:[%s2 + $0x2c] sm:$0xf]
    %v332 = vld [vmem:[%s2 + $0x30] sm:$0xf]
    %v333 = vld [vmem:[%s2 + $0x34] sm:$0xf]
    %v334 = vld [vmem:[%s2 + $0x38] sm:$0xf]
    %v335 = vld [vmem:[%s2 + $0x3c] sm:$0xf]
    %v336 = vld [vmem:[%s3] sm:$0xff]
    %v337 = vld [vmem:[%s3 + $0x8] sm:$0xff]
    %v338 = vld [vmem:[%s3 + $0x10] sm:$0xff]
    %v339 = vld [vmem:[%s3 + $0x18] sm:$0xff]
    %v356 = vunpack.c.l.b16 %v320
    %v357 = vunpack.c.l.b16 %v321
    %v358 = vunpack.c.l.b16 %v322
    %v359 = vunpack.c.l.b16 %v323
    %v360 = vunpack.c.l.b16 %v324
    %v361 = vunpack.c.l.b16 %v325
    %v362 = vunpack.c.l.b16 %v326
    %v363 = vunpack.c.l.b16 %v327
    %v364 = vunpack.c.l.b16 %v328
    %v365 = vunpack.c.l.b16 %v329
    %v366 = vunpack.c.l.b16 %v330
    %v367 = vunpack.c.l.b16 %v331
    %v368 = vunpack.c.l.b16 %v332
    %v369 = vunpack.c.l.b16 %v333
    %v370 = vunpack.c.l.b16 %v334
    %v371 = vunpack.c.l.b16 %v335
    %v372 = vpack.c.b16 %v357, %v356
    %v373 = vpack.c.b16 %v359, %v358
    %v374 = vpack.c.b16 %v361, %v360
    %v375 = vpack.c.b16 %v363, %v362
    %v376 = vpack.c.b16 %v365, %v364
    %v377 = vpack.c.b16 %v367, %v366
    %v378 = vpack.c.b16 %v369, %v368
    %v379 = vpack.c.b16 %v371, %v370
    %388 = vmatprep.subr.bf16.mxu0 0
    %389 = vmatpush1.bf16.msra.mxu0 %v379
    %390 = vmatprep.subr.bf16.mxu0 0
    %391 = vmatpush1.bf16.msra.mxu0 %v378
    %392 = vmatprep.subr.bf16.mxu0 0
    %393 = vmatpush1.bf16.msra.mxu0 %v377
    %394 = vmatprep.subr.bf16.mxu0 0
    %395 = vmatpush1.bf16.msra.mxu0 %v376
    %396 = vmatprep.subr.bf16.mxu0 0
    %397 = vmatpush1.bf16.msra.mxu0 %v375
    %398 = vmatprep.subr.bf16.mxu0 0
    %399 = vmatpush1.bf16.msra.mxu0 %v374
    %400 = vmatprep.subr.bf16.mxu0 0
    %401 = vmatpush1.bf16.msra.mxu0 %v373
    %402 = vmatprep.subr.bf16.mxu0 0
    %403 = vmatpush1.bf16.msra.mxu0 %v372
    %404 = vmatprep.subr.bf16.mxu0 0
    %405 = vmatpush2.bf16.msra.mxu0 0
    %406 = vmatprep.subr.bf16.mxu0 0
    %407 = vmatpush2.bf16.msra.mxu0 0
    %408 = vmatprep.subr.bf16.mxu0 0
    %409 = vmatpush2.bf16.msra.mxu0 0
    %410 = vmatprep.subr.bf16.mxu0 0
    %411 = vmatpush2.bf16.msra.mxu0 0
    %412 = vmatprep.subr.bf16.mxu0 0
    %413 = vmatpush2.bf16.msra.mxu0 0
    %414 = vmatprep.subr.bf16.mxu0 0
    %415 = vmatpush2.bf16.msra.mxu0 0
    %416 = vmatprep.subr.bf16.mxu0 0
    %417 = vmatpush2.bf16.msra.mxu0 0
    %418 = vmatprep.subr.bf16.mxu0 0
    %419 = vmatpush2.bf16.msra.mxu0 0
    %420 = vmatprep.mubr.bf16.mxu0 0
    %421 = vmatmul.mubr.bf16.gmra.mxu0 %v318
    %v422 = vpop.f32.mrf.mxu0
    %v423 = vadd.f32 %v336, %v422
    %v424 = vpop.f32.mrf.mxu0
    %v425 = vpop.f32.mrf.mxu0
    %v426 = vadd.f32 %v337, %v425
    %v427 = vpop.f32.mrf.mxu0
    %428 = vmatprep.mubr.bf16.mxu0 0
    %429 = vmatmul.mubr.bf16.gmra.mxu0 %v319
    %v430 = vpop.f32.mrf.mxu0
    %v431 = vadd.f32 %v338, %v430
    %v432 = vpop.f32.mrf.mxu0
    %v433 = vpop.f32.mrf.mxu0
    %v434 = vadd.f32 %v339, %v433
    %v435 = vpop.f32.mrf.mxu0
    %436 = vdwg.mxu0
    %v437 = vmax.f32 %v423, 0.0
    %v438 = vmax.f32 %v426, 0.0
    %v439 = vmax.f32 %v431, 0.0
    %v440 = vmax.f32 %v434, 0.0
    %441 = vst [vmem:[#allocation2] sm:$0xff] %v437
    %442 = vst [vmem:[#allocation2 + $0x8] sm:$0xff] %v438
    %443 = vst [vmem:[#allocation2 + $0x10] sm:$0xff] %v439
    %444 = vst [vmem:[#allocation2 + $0x18] sm:$0xff] %v440
    // Predicated region
    $region18: #{encoder_forward.9} parent=1 // pred_check
      _
    $region19: #{encoder_forward.9} parent=1 // pred_check_branch
      %446 = sbr.rel (0) target = $region21
    $region20: #{encoder_forward.9} parent=1 // pred_region
      %s448 = ssub.s32 512, 512
      %449 = vsyncadd [#allocation3], %s448
      %s450 = sshll.u32 [#allocation2], 4
      %s451 = int_to_ptr.vmem [resolvable:$true] %s450
      %456 = dma.vmem_to_hbm [thread:$0]  %s451, 512, %s4, [#allocation3], 128, 128, 8
    $region21: #{encoder_forward.9} parent=1 // pred_fallthru
      _
    // Predicated region
    $region22: #{encoder_forward.9} parent=1 // pred_check
      _
    $region23: #{encoder_forward.9} parent=1 // pred_check_branch
      %458 = sbr.rel (0) target = $region25
    $region24: #{encoder_forward.9} parent=1 // pred_region
      %459 = dma.done [#allocation3], 512
    $region25: #{encoder_forward.9} parent=1 // pred_fallthru
      _
    %460 = vsyncpa [#allocation3], 1

// kernel: encoder_forward.7
$region0: #{encoder_forward.7}
  #allocation0 [shape = 'u32[]', space=smem, size = 0x4, offset = 0x4, fixed_abs, tag = 'smem constant byte address 0x4 - core index']
  #allocation1 [shape = 'u32[144,128]{1,0:T(1,128)}', space=vmem, size = 0x12000, scoped, tag = 'internal scratch']
  %s0 = inlined_call_operand.vmem [shape: bf16[32,288], index: 0, kind: input, shape index: {}]
  %s1 = inlined_call_operand.vmem [shape: bf16[288,128], index: 1, kind: input, shape index: {}]
  %s2 = inlined_call_operand.vmem [shape: f32[1,128], index: 2, kind: input, shape index: {}]
  %s3 = inlined_call_operand.vmem [shape: f32[32,128], index: 3, kind: output, shape index: {}]
  %s4 = sld [smem:[#allocation0]]
  $region22: #{encoder_forward.7} parent=0
    _
  %s6 = ssub.s32 1, %s4
  %s7 = scalar_select 0, %s6, %s4
  // Predicated region
  $region2: #{encoder_forward.7} parent=0 // pred_check
    _
  $region3: #{encoder_forward.7} parent=0 // pred_check_branch
    %9 = sbr.rel (0) target = $region5
  $region4: #{encoder_forward.7} parent=0 // pred_region
    _
  $region5: #{encoder_forward.7} parent=0 // pred_fallthru
    _
  // Predicated region
  $region6: #{encoder_forward.7} parent=0 // pred_check
    _
  $region7: #{encoder_forward.7} parent=0 // pred_check_branch
    %11 = sbr.rel (0) target = $region9
  $region8: #{encoder_forward.7} parent=0 // pred_region
    _
  $region9: #{encoder_forward.7} parent=0 // pred_fallthru
    _
  // Predicated region
  $region10: #{encoder_forward.7} parent=0 // pred_check
    _
  $region11: #{encoder_forward.7} parent=0 // pred_check_branch
    %13 = sbr.rel (0) target = $region13
  $region12: #{encoder_forward.7} parent=0 // pred_region
    _
  $region13: #{encoder_forward.7} parent=0 // pred_fallthru
    _
  %v15 = vld [vmem:[%s0] sm:$0xff]
  %v16 = vld [vmem:[%s0 + $0x8] sm:$0xf]
  %v17 = vld [vmem:[%s0 + $0xc] sm:$0xff]
  %v18 = vld [vmem:[%s0 + $0x14] sm:$0xf]
  %v19 = vld [vmem:[%s0 + $0x18] sm:$0xff]
  %v20 = vld [vmem:[%s0 + $0x20] sm:$0xf]
  %v21 = vld [vmem:[%s0 + $0x24] sm:$0xff]
  %v22 = vld [vmem:[%s0 + $0x2c] sm:$0xf]
  %v23 = vld [vmem:[%s1] sm:$0xf]
  %v24 = vld [vmem:[%s1 + $0x4] sm:$0xf]
  %v25 = vld [vmem:[%s1 + $0x8] sm:$0xf]
  %v26 = vld [vmem:[%s1 + $0xc] sm:$0xf]
  %v27 = vld [vmem:[%s1 + $0x10] sm:$0xf]
  %v28 = vld [vmem:[%s1 + $0x14] sm:$0xf]
  %v29 = vld [vmem:[%s1 + $0x18] sm:$0xf]
  %v30 = vld [vmem:[%s1 + $0x1c] sm:$0xf]
  %v31 = vld [vmem:[%s1 + $0x20] sm:$0xf]
  %v32 = vld [vmem:[%s1 + $0x24] sm:$0xf]
  %v33 = vld [vmem:[%s1 + $0x28] sm:$0xf]
  %v34 = vld [vmem:[%s1 + $0x2c] sm:$0xf]
  %v35 = vld [vmem:[%s1 + $0x30] sm:$0xf]
  %v36 = vld [vmem:[%s1 + $0x34] sm:$0xf]
  %v37 = vld [vmem:[%s1 + $0x38] sm:$0xf]
  %v38 = vld [vmem:[%s1 + $0x3c] sm:$0xf]
  %v39 = vld [vmem:[%s1 + $0x40] sm:$0xf]
  %v40 = vld [vmem:[%s1 + $0x44] sm:$0xf]
  %v41 = vld [vmem:[%s1 + $0x48] sm:$0xf]
  %v42 = vld [vmem:[%s1 + $0x4c] sm:$0xf]
  %v43 = vld [vmem:[%s1 + $0x50] sm:$0xf]
  %v44 = vld [vmem:[%s1 + $0x54] sm:$0xf]
  %v45 = vld [vmem:[%s1 + $0x58] sm:$0xf]
  %v46 = vld [vmem:[%s1 + $0x5c] sm:$0xf]
  %v47 = vld [vmem:[%s1 + $0x60] sm:$0xf]
  %v48 = vld [vmem:[%s1 + $0x64] sm:$0xf]
  %v49 = vld [vmem:[%s1 + $0x68] sm:$0xf]
  %v50 = vld [vmem:[%s1 + $0x6c] sm:$0xf]
  %v51 = vld [vmem:[%s1 + $0x70] sm:$0xf]
  %v52 = vld [vmem:[%s1 + $0x74] sm:$0xf]
  %v53 = vld [vmem:[%s1 + $0x78] sm:$0xf]
  %v54 = vld [vmem:[%s1 + $0x7c] sm:$0xf]
  %v55 = vld [vmem:[%s1 + $0x80] sm:$0xf]
  %v56 = vld [vmem:[%s1 + $0x84] sm:$0xf]
  %v57 = vld [vmem:[%s1 + $0x88] sm:$0xf]
  %v58 = vld [vmem:[%s1 + $0x8c] sm:$0xf]
  %v59 = vld [vmem:[%s2] sm:$0x1]
  %v61 = vlaneseq
  %v62 = vshrl.u32 %v61, 7
  %v63 = vsub.s32 0, %v62
  %v64 = vrot.slane %v59, %v63
  %v74 = vunpack.c.l.b16 %v15
  %v75 = vunpack.c.h.b16 %v15
  %v76 = vunpack.c.l.b16 %v16
  %v77 = vunpack.c.l.b16 %v17
  %v78 = vunpack.c.h.b16 %v17
  %v79 = vunpack.c.l.b16 %v18
  %v80 = vunpack.c.l.b16 %v19
  %v81 = vunpack.c.h.b16 %v19
  %v82 = vunpack.c.l.b16 %v20
  %v83 = vunpack.c.l.b16 %v21
  %v84 = vunpack.c.h.b16 %v21
  %v85 = vunpack.c.l.b16 %v22
  %v86 = vpack.c.b16 %v77, %v74
  %v87 = vpack.c.b16 %v78, %v75
  %v88 = vpack.c.b16 %v79, %v76
  %v89 = vpack.c.b16 %v83, %v80
  %v90 = vpack.c.b16 %v84, %v81
  %v91 = vpack.c.b16 %v85, %v82
  %v132 = vunpack.c.l.b16 %v23
  %v133 = vunpack.c.l.b16 %v24
  %v134 = vunpack.c.l.b16 %v25
  %v135 = vunpack.c.l.b16 %v26
  %v136 = vunpack.c.l.b16 %v27
  %v137 = vunpack.c.l.b16 %v28
  %v138 = vunpack.c.l.b16 %v29
  %v139 = vunpack.c.l.b16 %v30
  %v140 = vunpack.c.l.b16 %v31
  %v141 = vunpack.c.l.b16 %v32
  %v142 = vunpack.c.l.b16 %v33
  %v143 = vunpack.c.l.b16 %v34
  %v144 = vunpack.c.l.b16 %v35
  %v145 = vunpack.c.l.b16 %v36
  %v146 = vunpack.c.l.b16 %v37
  %v147 = vunpack.c.l.b16 %v38
  %v148 = vunpack.c.l.b16 %v39
  %v149 = vunpack.c.l.b16 %v40
  %v150 = vunpack.c.l.b16 %v41
  %v151 = vunpack.c.l.b16 %v42
  %v152 = vunpack.c.l.b16 %v43
  %v153 = vunpack.c.l.b16 %v44
  %v154 = vunpack.c.l.b16 %v45
  %v155 = vunpack.c.l.b16 %v46
  %v156 = vunpack.c.l.b16 %v47
  %v157 = vunpack.c.l.b16 %v48
  %v158 = vunpack.c.l.b16 %v49
  %v159 = vunpack.c.l.b16 %v50
  %v160 = vunpack.c.l.b16 %v51
  %v161 = vunpack.c.l.b16 %v52
  %v162 = vunpack.c.l.b16 %v53
  %v163 = vunpack.c.l.b16 %v54
  %v164 = vunpack.c.l.b16 %v55
  %v165 = vunpack.c.l.b16 %v56
  %v166 = vunpack.c.l.b16 %v57
  %v167 = vunpack.c.l.b16 %v58
  %v168 = vpack.c.b16 %v133, %v132
  %v169 = vpack.c.b16 %v135, %v134
  %v170 = vpack.c.b16 %v137, %v136
  %v171 = vpack.c.b16 %v139, %v138
  %v172 = vpack.c.b16 %v141, %v140
  %v173 = vpack.c.b16 %v143, %v142
  %v174 = vpack.c.b16 %v145, %v144
  %v175 = vpack.c.b16 %v147, %v146
  %v176 = vpack.c.b16 %v149, %v148
  %v177 = vpack.c.b16 %v151, %v150
  %v178 = vpack.c.b16 %v153, %v152
  %v179 = vpack.c.b16 %v155, %v154
  %v180 = vpack.c.b16 %v157, %v156
  %v181 = vpack.c.b16 %v159, %v158
  %v182 = vpack.c.b16 %v161, %v160
  %v183 = vpack.c.b16 %v163, %v162
  %v184 = vpack.c.b16 %v165, %v164
  %v185 = vpack.c.b16 %v167, %v166
  %vm204 = vcmask 261120
  %v206 = vsel %vm204, %v88, 0
  %v209 = vsel %vm204, %v91, 0
  %211 = vmatprep.subr.bf16.mxu0 0
  %212 = vmatpush1.bf16.msra.mxu0 %v175
  %213 = vmatprep.subr.bf16.mxu0 0
  %214 = vmatpush1.bf16.msra.mxu0 %v174
  %215 = vmatprep.subr.bf16.mxu0 0
  %216 = vmatpush1.bf16.msra.mxu0 %v173
  %217 = vmatprep.subr.bf16.mxu0 0
  %218 = vmatpush1.bf16.msra.mxu0 %v172
  %219 = vmatprep.subr.bf16.mxu0 0
  %220 = vmatpush1.bf16.msra.mxu0 %v171
  %221 = vmatprep.subr.bf16.mxu0 0
  %222 = vmatpush1.bf16.msra.mxu0 %v170
  %223 = vmatprep.subr.bf16.mxu0 0
  %224 = vmatpush1.bf16.msra.mxu0 %v169
  %225 = vmatprep.subr.bf16.mxu0 0
  %226 = vmatpush1.bf16.msra.mxu0 %v168
  %227 = vmatprep.subr.bf16.mxu0 0
  %228 = vmatpush2.bf16.msra.mxu0 %v183
  %229 = vmatprep.subr.bf16.mxu0 0
  %230 = vmatpush2.bf16.msra.mxu0 %v182
  %231 = vmatprep.subr.bf16.mxu0 0
  %232 = vmatpush2.bf16.msra.mxu0 %v181
  %233 = vmatprep.subr.bf16.mxu0 0
  %234 = vmatpush2.bf16.msra.mxu0 %v180
  %235 = vmatprep.subr.bf16.mxu0 0
  %236 = vmatpush2.bf16.msra.mxu0 %v179
  %237 = vmatprep.subr.bf16.mxu0 0
  %238 = vmatpush2.bf16.msra.mxu0 %v178
  %239 = vmatprep.subr.bf16.mxu0 0
  %240 = vmatpush2.bf16.msra.mxu0 %v177
  %241 = vmatprep.subr.bf16.mxu0 0
  %242 = vmatpush2.bf16.msra.mxu0 %v176
  %243 = vmatprep.mubr.bf16.mxu0 %v87
  %244 = vmatmul.mubr.bf16.gmra.mxu0 %v86
  %v245 = vpop.f32.mrf.mxu0
  %v246 = vadd.f32 %v64, %v245
  %v247 = vpop.f32.mrf.mxu0
  %v248 = vpop.f32.mrf.mxu0
  %v249 = vadd.f32 %v64, %v248
  %v250 = vpop.f32.mrf.mxu0
  %251 = vmatprep.mubr.bf16.mxu0 %v90
  %252 = vmatmul.mubr.bf16.gmra.mxu0 %v89
  %v253 = vpop.f32.mrf.mxu0
  %v254 = vadd.f32 %v64, %v253
  %v255 = vpop.f32.mrf.mxu0
  %v256 = vpop.f32.mrf.mxu0
  %v257 = vadd.f32 %v64, %v256
  %v258 = vpop.f32.mrf.mxu0
  %259 = vdwg.mxu0
  %260 = vmatprep.subr.bf16.mxu0 0
  %261 = vmatpush1.bf16.msra.mxu0 0
  %262 = vmatprep.subr.bf16.mxu0 0
  %263 = vmatpush1.bf16.msra.mxu0 0
  %264 = vmatprep.subr.bf16.mxu0 0
  %265 = vmatpush1.bf16.msra.mxu0 0
  %266 = vmatprep.subr.bf16.mxu0 0
  %267 = vmatpush1.bf16.msra.mxu0 0
  %268 = vmatprep.subr.bf16.mxu0 0
  %269 = vmatpush1.bf16.msra.mxu0 0
  %270 = vmatprep.subr.bf16.mxu0 0
  %271 = vmatpush1.bf16.msra.mxu0 0
  %272 = vmatprep.subr.bf16.mxu0 0
  %273 = vmatpush1.bf16.msra.mxu0 %v185
  %274 = vmatprep.subr.bf16.mxu0 0
  %275 = vmatpush1.bf16.msra.mxu0 %v184
  %276 = vmatprep.subr.bf16.mxu0 0
  %277 = vmatpush2.bf16.msra.mxu0 0
  %278 = vmatprep.subr.bf16.mxu0 0
  %279 = vmatpush2.bf16.msra.mxu0 0
  %280 = vmatprep.subr.bf16.mxu0 0
  %281 = vmatpush2.bf16.msra.mxu0 0
  %282 = vmatprep.subr.bf16.mxu0 0
  %283 = vmatpush2.bf16.msra.mxu0 0
  %284 = vmatprep.subr.bf16.mxu0 0
  %285 = vmatpush2.bf16.msra.mxu0 0
  %286 = vmatprep.subr.bf16.mxu0 0
  %287 = vmatpush2.bf16.msra.mxu0 0
  %288 = vmatprep.subr.bf16.mxu0 0
  %289 = vmatpush2.bf16.msra.mxu0 0
  %290 = vmatprep.subr.bf16.mxu0 0
  %291 = vmatpush2.bf16.msra.mxu0 0
  %292 = vmatprep.mubr.bf16.mxu0 0
  %293 = vmatmul.mubr.bf16.gmra.mxu0 %v206
  %v294 = vpop.f32.mrf.mxu0
  %v295 = vadd.f32 %v246, %v294
  %v296 = vpop.f32.mrf.mxu0
  %v297 = vpop.f32.mrf.mxu0
  %v298 = vadd.f32 %v249, %v297
  %v299 = vpop.f32.mrf.mxu0
  %300 = vmatprep.mubr.bf16.mxu0 0
  %301 = vmatmul.mubr.bf16.gmra.mxu0 %v209
  %v302 = vpop.f32.mrf.mxu0
  %v303 = vadd.f32 %v254, %v302
  %v304 = vpop.f32.mrf.mxu0
  %v305 = vpop.f32.mrf.mxu0
  %v306 = vadd.f32 %v257, %v305
  %v307 = vpop.f32.mrf.mxu0
  %308 = vdwg.mxu0
  %309 = vst [vmem:[%s3] sm:$0xff] %v295
  %310 = vst [vmem:[%s3 + $0x8] sm:$0xff] %v298
  %311 = vst [vmem:[%s3 + $0x10] sm:$0xff] %v303
  %312 = vst [vmem:[%s3 + $0x18] sm:$0xff] %v306
  // Predicated region
  $region14: #{encoder_forward.7} parent=0 // pred_check
    _
  $region15: #{encoder_forward.7} parent=0 // pred_check_branch
    %314 = sbr.rel (0) target = $region17
  $region16: #{encoder_forward.7} parent=0 // pred_region
    _
  $region17: #{encoder_forward.7} parent=0 // pred_fallthru
    _
  // Predicated region
  $region18: #{encoder_forward.7} parent=0 // pred_check
    _
  $region19: #{encoder_forward.7} parent=0 // pred_check_branch
    %316 = sbr.rel (0) target = $region21
  $region20: #{encoder_forward.7} parent=0 // pred_region
    _
  $region21: #{encoder_forward.7} parent=0 // pred_fallthru
    _

</llo_original>
